<compile_context>
chip_gen: v5e
topology: v5e:2x2
jax: 0.10.0
libtpu: 0.0.40
codegen_flags: <defaults>
</compile_context>

<pallas_src>
import functools

import jax
import jax.numpy as jnp
from jax.experimental import pallas as pl
from jax.experimental.pallas import tpu as pltpu


def _linear_gen_kernel(x_ref, w_ref, o_ref, *, hh, cps_per_step):
    # x_ref : (B, 1024)                -- full input features (resident)
    # w_ref : (cps_per_step*hh, 1024)  -- native (out, in) weight rows for this step
    # o_ref : (B, cps_per_step*hh)     -- normalized flattened heatmaps
    y = jax.lax.dot_general(
        x_ref[...],
        w_ref[...],
        dimension_numbers=(((1,), (1,)), ((), ())),   # contract last dims (trans_b)
        preferred_element_type=jnp.float32,
    )
    # Per-control-point min/max normalization on static lane slices.
    # hh is a multiple of 128 here, so each slice is tile-aligned.
    for c in range(cps_per_step):
        ys = y[:, c * hh:(c + 1) * hh]
        ys = ys - jnp.min(ys, axis=-1, keepdims=True)
        # Matches PyTorch: no epsilon -> constant rows give inf/nan, same as ref.
        inv = pl.reciprocal(jnp.max(ys, axis=-1, keepdims=True), approx=False)
        o_ref[:, c * hh:(c + 1) * hh] = (ys * inv).astype(o_ref.dtype)


def _pick_cps_per_step(num_cp, hh, bytes_per_elem, max_block_bytes=8 << 20):
    """Largest divisor of num_cp whose weight block fits the VMEM budget while
    keeping at least 2 grid steps (so both v7x TensorCores get work)."""
    best = 1
    for d in range(1, num_cp + 1):
        if num_cp % d:
            continue
        if d * hh * 1024 * bytes_per_elem > max_block_bytes:
            continue
        if num_cp // d >= 2:
            best = d
    return best


def linear_generator(x, w, num_cp, heatmap_size):
    """x: (B, 1024) f32, w: (num_cp*H*H, 1024) f32 (native PyTorch Linear weight)."""
    B, in_dim = x.shape
    assert in_dim == 1024
    hh = heatmap_size * heatmap_size
    assert w.shape == (num_cp * hh, in_dim)

    cps = _pick_cps_per_step(num_cp, hh, jnp.dtype(w.dtype).itemsize)
    n_steps = num_cp // cps

    kernel = functools.partial(_linear_gen_kernel, hh=hh, cps_per_step=cps)

    out_flat = pl.pallas_call(
        kernel,
        out_shape=jax.ShapeDtypeStruct((B, num_cp * hh), jnp.float32),
        grid_spec=pltpu.PrefetchScalarGridSpec(
            num_scalar_prefetch=0,
            grid=(n_steps,),
            in_specs=[
                # Same x block every step (block == full array, so (8,128) rule ok;
                # unchanged block index -> Pallas skips the re-fetch).
                pl.BlockSpec((B, in_dim), lambda j: (0, 0)),
                # Native-layout weight rows for this group of control points.
                pl.BlockSpec((cps * hh, in_dim), lambda j: (j, 0)),
            ],
            # Lane-dense output slab; the (B, num_cp, H, H) view is wrapper glue.
            out_specs=pl.BlockSpec((B, cps * hh), lambda j: (0, j)),
        ),
        compiler_params=pltpu.CompilerParams(
            dimension_semantics=("parallel",),
        ),
    )(x, w)

    return out_flat.reshape(B, num_cp, heatmap_size, heatmap_size)


def _reference(x, w, num_cp, heatmap_size):
    hh = heatmap_size * heatmap_size
    y = x @ w.T
    y = y.reshape(-1, num_cp, hh)
    y = y - jnp.min(y, axis=-1, keepdims=True)
    y = y / jnp.max(y, axis=-1, keepdims=True)
    return y.reshape(-1, num_cp, heatmap_size, heatmap_size)


if __name__ == "__main__":
    num_cp = 4
    heatmap_size = 16   # H*H = 256, out_features = 4 * 256 = 1024
    batch = 2

    key = jax.random.PRNGKey(0)
    kx, kw = jax.random.split(key)
    x = jax.random.normal(kx, (batch, 1024), dtype=jnp.float32)
    # Deterministic synthetic weight (PyTorch shape: (out_features, in_features)).
    w = jax.random.normal(
        kw, (num_cp * heatmap_size * heatmap_size, 1024), dtype=jnp.float32
    ) * 0.02

    out = linear_generator(x, w, num_cp, heatmap_size)
    out = jax.block_until_ready(out)

    ref = _reference(x, w, num_cp, heatmap_size)
    assert out.shape == (batch, num_cp, heatmap_size, heatmap_size)
    assert jnp.allclose(out, ref, rtol=1e-4, atol=1e-4)

    print("KERNEL_OK")
</pallas_src>

<mosaic_0001>
module attributes {stable_mosaic.version = 11 : i64} {
  func.func @_linear_gen_kernel(%arg0: i32, %arg1: memref<2x1024xf32, #tpu.memory_space<vmem>>, %arg2: memref<512x1024xf32, #tpu.memory_space<vmem>>, %arg3: memref<2x512xf32, #tpu.memory_space<vmem>>) attributes {dimension_semantics = [#tpu.dimension_semantics<parallel>], iteration_bounds = array<i64: 2>, scalar_prefetch = 0 : i64, scratch_operands = 0 : i64, tpu.core_type = #tpu.core_type<tc>, window_params = [{pipeline_mode = #tpu.pipeline_mode<synchronous>, transform_indices = @transform_0, window_bounds = array<i64: 2, 1024>}, {transform_indices = @transform_1, window_bounds = array<i64: 512, 1024>}, {transform_indices = @transform_2, window_bounds = array<i64: 2, 512>}]} {
    %c0 = arith.constant 0 : index
    %c0_0 = arith.constant 0 : index
    %0 = vector.load %arg1[%c0, %c0_0] : memref<2x1024xf32, #tpu.memory_space<vmem>>, vector<2x1024xf32>
    %c0_1 = arith.constant 0 : index
    %c0_2 = arith.constant 0 : index
    %1 = vector.load %arg2[%c0_1, %c0_2] : memref<512x1024xf32, #tpu.memory_space<vmem>>, vector<512x1024xf32>
    %cst = arith.constant dense<0.000000e+00> : vector<2x512xf32>
    %2 = tpu.matmul %0, %1, %cst {dimension_numbers = #tpu.dot_dimension_numbers<[1], [1], [0], [0], [0, 0, 1, 0], [], []>} : vector<2x1024xf32>, vector<512x1024xf32>, vector<2x512xf32> -> vector<2x512xf32>
    %3 = vector.extract_strided_slice %2 {offsets = [0, 0], sizes = [2, 256], strides = [1, 1]} : vector<2x512xf32> to vector<2x256xf32>
    %cst_3 = arith.constant dense<0x7F800000> : vector<2xf32>
    %4 = vector.multi_reduction <minimumf>, %3, %cst_3 [1] : vector<2x256xf32> to vector<2xf32>
    %5 = vector.shape_cast %4 : vector<2xf32> to vector<2x1xf32>
    %6 = vector.broadcast %5 : vector<2x1xf32> to vector<2x256xf32>
    %7 = arith.subf %3, %6 : vector<2x256xf32>
    %cst_4 = arith.constant dense<0xFF800000> : vector<2xf32>
    %8 = vector.multi_reduction <maximumf>, %7, %cst_4 [1] : vector<2x256xf32> to vector<2xf32>
    %9 = vector.shape_cast %8 : vector<2xf32> to vector<2x1xf32>
    %10 = tpu.reciprocal %9 : vector<2x1xf32> -> vector<2x1xf32>
    %11 = vector.broadcast %10 : vector<2x1xf32> to vector<2x256xf32>
    %12 = arith.mulf %7, %11 : vector<2x256xf32>
    %c0_5 = arith.constant 0 : index
    %c0_6 = arith.constant 0 : index
    %13 = vector.load %arg3[%c0_5, %c0_6] : memref<2x512xf32, #tpu.memory_space<vmem>>, vector<2x256xf32>
    tpu.vector_store %arg3[%c0_5, %c0_6], %12 {strides = array<i32>} : memref<2x512xf32, #tpu.memory_space<vmem>>, vector<2x256xf32>,
    %14 = vector.extract_strided_slice %2 {offsets = [0, 256], sizes = [2, 256], strides = [1, 1]} : vector<2x512xf32> to vector<2x256xf32>
    %cst_7 = arith.constant dense<0x7F800000> : vector<2xf32>
    %15 = vector.multi_reduction <minimumf>, %14, %cst_7 [1] : vector<2x256xf32> to vector<2xf32>
    %16 = vector.shape_cast %15 : vector<2xf32> to vector<2x1xf32>
    %17 = vector.broadcast %16 : vector<2x1xf32> to vector<2x256xf32>
    %18 = arith.subf %14, %17 : vector<2x256xf32>
    %cst_8 = arith.constant dense<0xFF800000> : vector<2xf32>
    %19 = vector.multi_reduction <maximumf>, %18, %cst_8 [1] : vector<2x256xf32> to vector<2xf32>
    %20 = vector.shape_cast %19 : vector<2xf32> to vector<2x1xf32>
    %21 = tpu.reciprocal %20 : vector<2x1xf32> -> vector<2x1xf32>
    %22 = vector.broadcast %21 : vector<2x1xf32> to vector<2x256xf32>
    %23 = arith.mulf %18, %22 : vector<2x256xf32>
    %c0_9 = arith.constant 0 : index
    %c256 = arith.constant 256 : index
    %24 = vector.load %arg3[%c0_9, %c256] : memref<2x512xf32, #tpu.memory_space<vmem>>, vector<2x256xf32>
    tpu.vector_store %arg3[%c0_9, %c256], %23 {strides = array<i32>} : memref<2x512xf32, #tpu.memory_space<vmem>>, vector<2x256xf32>,
    return
  }
  func.func @transform_0(%arg0: i32) -> (i32, i32) {
    %c0_i32 = arith.constant 0 : i32
    %c0_i32_0 = arith.constant 0 : i32
    %c0_i32_1 = arith.constant 0 : i32
    return %c0_i32, %c0_i32_0 : i32, i32
  }
  func.func @transform_1(%arg0: i32) -> (i32, i32) {
    %c0_i32 = arith.constant 0 : i32
    %c0_i32_0 = arith.constant 0 : i32
    return %arg0, %c0_i32 : i32, i32
  }
  func.func @transform_2(%arg0: i32) -> (i32, i32) {
    %c0_i32 = arith.constant 0 : i32
    %c0_i32_0 = arith.constant 0 : i32
    return %c0_i32, %arg0 : i32, i32
  }
}

</mosaic_0001>

<llo_original>
// kernel: tpu_custom_call.1
$region0: #{tpu_custom_call.1}
  #allocation0 [shape = 'u32[]', space=smem, size = 0x4, offset = 0x4, fixed_abs, tag = 'smem constant byte address 0x4 - core index']
  #allocation1 [shape = 'u32[72,128]{1,0:T(1,128)}', space=vmem, size = 0x9000, scoped, tag = 'internal scratch']
  %s0 = inlined_call_operand.hbm [shape: f32[2,1024], index: 0, kind: input, shape index: {}]
  %s1 = inlined_call_operand.hbm [shape: f32[1024,1024], index: 1, kind: input, shape index: {}]
  %s2 = inlined_call_operand.hbm [shape: f32[2,1024], index: 2, kind: output, shape index: {}]
  %s3 = sld [smem:[#allocation0]]
  $region49: #{tpu_custom_call.1} parent=0
    _
  %s5 = ssub.s32 1, %s3
  %s6 = scalar_select 0, %s5, %s3
  $region1: #{tpu_custom_call.1} parent=0
    #allocation2 [shape = 'u8[8192]{0}', space=vmem, size = 0x2000, scoped, tag = 'input window, operand 0, single buffered']
    #allocation3 [shape = 's32[2]{0}', space=sflag, size = 0x8, scoped, tag = 'scoped memory for tpu_custom_call.1']
    #allocation4 [shape = 's32[2]{0}', space=sflag, size = 0x8, scoped, tag = 'scoped memory for tpu_custom_call.1']
    #allocation5 [shape = 'u8[4194304]{0}', space=vmem, size = 0x400000, scoped, tag = 'input window, operand 1']
    #allocation6 [shape = 's32[2]{0}', space=sflag, size = 0x8, scoped, tag = 'scoped memory for tpu_custom_call.1']
    #allocation7 [shape = 'u8[8192]{0}', space=vmem, size = 0x2000, scoped, tag = 'output window, operand 0']
    %7 = vsyncpa [#allocation3], 0
    %8 = vsyncpa [#allocation6], 0
    %s9 = scalar_lea.sflag [#allocation6], 1
    %10 = vsyncpa %s9, 0
    %11 = vsyncpa [#allocation4], 0
    %s12 = scalar_lea.sflag [#allocation4], 1
    %13 = vsyncpa %s12, 0
    loop: start=0, step=1, limit=4
    $region2: #{tpu_custom_call.1} parent=1 // loop_pre_header
      _
    $region3: #{tpu_custom_call.1} parent=1 // loop_header
      %s15 = sphi 0, %s19
      %p16 = scmp.ge.s32.totalorder %s15, 4
      %s23 = sphi 0, %s23
      %s25 = sphi 0, %s23
      %s26 = sphi 0, %s25
      %s40 = sphi 0, %s26
      %s46 = sphi 0, %s48
      %s49 = sphi 0, %s46
      %s50 = sphi 0, %s49
      %s66 = sphi 0, %s50
      %s72 = sphi 0, %s74
      %s75 = sphi 0, %s72
      %s76 = sphi 0, %s75
      %s92 = sphi 0, %s76
    $region4: #{tpu_custom_call.1} parent=1 // loop_header_branch
      %18 = sbr.rel (%p16) target = $region8
    $region5: #{tpu_custom_call.1} parent=1 // loop_body
      %s20 = ssub.s32 %s15, 1
      %s21 = ssub.s32 %s15, 2
      %s22 = sadd.s32 %s15, 1
      %s24 = sadd.s32 %s23, 1
      %p27 = scmp.eq.s32.totalorder %s15, 1
      %p28 = scmp.ne.s32.totalorder %s23, %s25
      %p29 = scmp.eq.s32.totalorder %s15, 0
      %p30 = por %p28, %p29
      %p31 = scmp.ne.s32.totalorder %s23, %s25
      %p32 = scmp.eq.s32.totalorder %s20, 1
      %p33 = por %p31, %p32
      %p34 = scmp.ne.s32.totalorder %s25, %s26
      %p35 = scmp.eq.s32.totalorder %s20, 0
      %p36 = por %p34, %p35
      %p37 = scmp.ne.s32.totalorder %s25, %s26
      %p38 = scmp.eq.s32.totalorder %s21, 1
      %p39 = por %p37, %p38
      %p41 = scmp.ne.s32.totalorder %s26, %s40
      %p42 = scmp.eq.s32.totalorder %s21, 0
      %p43 = por %p41, %p42
      %s44 = ssub.s32 %s15, %s22
      %p45 = scmp.eq.s32.totalorder %s44, 0
      %s47 = sadd.s32 %s46, 1
      %s48 = scalar_select %p45, %s46, %s47
      %p51 = pneg %p45
      %p52 = scmp.eq.s32.totalorder %s15, 1
      %p53 = por %p51, %p52
      %p54 = scmp.ne.s32.totalorder %s46, %s49
      %p55 = scmp.eq.s32.totalorder %s15, 0
      %p56 = por %p54, %p55
      %p57 = scmp.ne.s32.totalorder %s46, %s49
      %p58 = scmp.eq.s32.totalorder %s20, 1
      %p59 = por %p57, %p58
      %p60 = scmp.ne.s32.totalorder %s49, %s50
      %p61 = scmp.eq.s32.totalorder %s20, 0
      %p62 = por %p60, %p61
      %p63 = scmp.ne.s32.totalorder %s49, %s50
      %p64 = scmp.eq.s32.totalorder %s21, 1
      %p65 = por %p63, %p64
      %p67 = scmp.ne.s32.totalorder %s50, %s66
      %p68 = scmp.eq.s32.totalorder %s21, 0
      %p69 = por %p67, %p68
      %s70 = ssub.s32 %s15, %s22
      %p71 = scmp.eq.s32.totalorder %s70, 0
      %s73 = sadd.s32 %s72, 1
      %s74 = scalar_select %p71, %s72, %s73
      %p77 = pneg %p71
      %p78 = scmp.eq.s32.totalorder %s15, 1
      %p79 = por %p77, %p78
      %p80 = scmp.ne.s32.totalorder %s72, %s75
      %p81 = scmp.eq.s32.totalorder %s15, 0
      %p82 = por %p80, %p81
      %p83 = scmp.ne.s32.totalorder %s72, %s75
      %p84 = scmp.eq.s32.totalorder %s20, 1
      %p85 = por %p83, %p84
      %p86 = scmp.ne.s32.totalorder %s75, %s76
      %p87 = scmp.eq.s32.totalorder %s20, 0
      %p88 = por %p86, %p87
      %p89 = scmp.ne.s32.totalorder %s75, %s76
      %p90 = scmp.eq.s32.totalorder %s21, 1
      %p91 = por %p89, %p90
      %p93 = scmp.ne.s32.totalorder %s76, %s92
      %p94 = scmp.eq.s32.totalorder %s21, 0
      %p95 = por %p93, %p94
      %p96 = scmp.le.s32.totalorder 1, %s15
      %p97 = scmp.lt.s32.totalorder %s15, 3
      %p98 = pnand %p96, %p97
      %p99 = pneg %p98
      // Predicated region
      $region9: #{tpu_custom_call.1} parent=5 // pred_check
        _
      $region10: #{tpu_custom_call.1} parent=5 // pred_check_branch
        %101 = sbr.rel (%p98) target = $region12
      $region11: #{tpu_custom_call.1} parent=5 // pred_region
        %s102 = ssub.s32 %s15, 1
        // Predicated region
        $region13: #{tpu_custom_call.1} parent=11 // pred_check
          %p103 = pneg %p36
        $region14: #{tpu_custom_call.1} parent=11 // pred_check_branch
          %105 = sbr.rel (%p103) target = $region16
        $region15: #{tpu_custom_call.1} parent=11 // pred_region
          %107 = vsyncadd [#allocation3], 0
          %s109 = sshll.u32 %s0, 4
          %s110 = int_to_ptr.hbm [resolvable:$true] %s109
          %s111 = sshll.u32 [#allocation2], 4
          %s112 = int_to_ptr.vmem [resolvable:$true] %s111
          %114 = dma.hbm_to_vmem [thread:$0]  %s110, 256, %s112, [#allocation3]
        $region16: #{tpu_custom_call.1} parent=11 // pred_fallthru
          _
      $region12: #{tpu_custom_call.1} parent=5 // pred_fallthru
        _
      %p115 = scmp.lt.s32.totalorder %s15, 2
      // Predicated region
      $region17: #{tpu_custom_call.1} parent=5 // pred_check
        %p116 = pneg %p115
      $region18: #{tpu_custom_call.1} parent=5 // pred_check_branch
        %118 = sbr.rel (%p116) target = $region20
      $region19: #{tpu_custom_call.1} parent=5 // pred_region
        // Predicated region
        $region21: #{tpu_custom_call.1} parent=19 // pred_check
          %p119 = pneg %p56
        $region22: #{tpu_custom_call.1} parent=19 // pred_check_branch
          %121 = sbr.rel (%p119) target = $region24
        $region23: #{tpu_custom_call.1} parent=19 // pred_region
          %s122 = sand.u32 %s46, 1
          %s123 = scalar_lea.sflag [#allocation6], %s122
          %s124 = sand.u32 %s46, 1
          %s125 = smul.addr %s124, 4096
          %s126 = scalar_lea.vmem [#allocation5], %s125
          %s127 = smul.u32 64, %s15
          %129 = vsyncadd %s123, 0
          %s130 = smul.addr %s127, 8
          %s131 = smul.addr %s130, 8
          %s132 = scalar_lea.hbm %s1, %s131
          %s133 = sshll.u32 %s132, 4
          %s134 = int_to_ptr.hbm [resolvable:$true] %s133
          %s135 = sshll.u32 %s126, 4
          %s136 = int_to_ptr.vmem [resolvable:$true] %s135
          %141 = dma.hbm_to_vmem [thread:$0]  %s134, 65536, %s136, %s123, 1024, 1024, 64
        $region24: #{tpu_custom_call.1} parent=19 // pred_fallthru
          _
      $region20: #{tpu_custom_call.1} parent=5 // pred_fallthru
        _
      %p142 = scmp.le.s32.totalorder 1, %s15
      %p143 = scmp.lt.s32.totalorder %s15, 3
      %p144 = pnand %p142, %p143
      %p145 = pneg %p144
      // Predicated region
      $region25: #{tpu_custom_call.1} parent=5 // pred_check
        _
      $region26: #{tpu_custom_call.1} parent=5 // pred_check_branch
        %147 = sbr.rel (%p144) target = $region28
      $region27: #{tpu_custom_call.1} parent=5 // pred_region
        %s148 = ssub.s32 %s15, 1
        // Predicated region
        $region29: #{tpu_custom_call.1} parent=27 // pred_check
          %p149 = pneg %p36
        $region30: #{tpu_custom_call.1} parent=27 // pred_check_branch
          %151 = sbr.rel (%p149) target = $region32
        $region31: #{tpu_custom_call.1} parent=27 // pred_region
          %153 = dma.done [#allocation3], 256
        $region32: #{tpu_custom_call.1} parent=27 // pred_fallthru
          _
        %s154 = sand.u32 %s49, 1
        %s155 = scalar_lea.sflag [#allocation6], %s154
        %s156 = sand.u32 %s49, 1
        %s157 = smul.addr %s156, 4096
        %s158 = scalar_lea.vmem [#allocation5], %s157
        // Predicated region
        $region33: #{tpu_custom_call.1} parent=27 // pred_check
          %p159 = pneg %p62
        $region34: #{tpu_custom_call.1} parent=27 // pred_check_branch
          %161 = sbr.rel (%p159) target = $region36
        $region35: #{tpu_custom_call.1} parent=27 // pred_region
          %163 = dma.done %s155, 65536
        $region36: #{tpu_custom_call.1} parent=27 // pred_fallthru
          _
        %p164 = pneg %p36
        %p165 = pneg %p33
        %s166 = sand.u32 %s49, 1
        %s167 = scalar_lea.sflag [#allocation6], %s166
        %s168 = sand.u32 %s49, 1
        %s169 = smul.addr %s168, 4096
        %s170 = scalar_lea.vmem [#allocation5], %s169
        %p171 = pneg %p62
        %p172 = pneg %p59
        %p173 = pneg %p88
        %p174 = pneg %p85
        %s175 = sand.u32 %s75, 1
        %s176 = scalar_lea.sflag [#allocation4], %s175
        %s177 = sand.u32 %s75, 1
        %s178 = smul.addr %s177, 8
        %s179 = scalar_lea.vmem [#allocation7], %s178
        %s180 = smul.u32 64, %s20
        %s181 = smul.u32 4, %s20
        %v182 = vld [vmem:[#allocation2] sm:$0xff]
        %v183 = vld [vmem:[#allocation2 + $0x8] sm:$0xff]
        %v184 = vld [vmem:[%s158] sm:$0xff]
        %v185 = vld [vmem:[%s158 + $0x8] sm:$0xff]
        %v186 = vld [vmem:[%s158 + $0x10] sm:$0xff]
        %v187 = vld [vmem:[%s158 + $0x18] sm:$0xff]
        %v188 = vld [vmem:[%s158 + $0x20] sm:$0xff]
        %v189 = vld [vmem:[%s158 + $0x28] sm:$0xff]
        %v190 = vld [vmem:[%s158 + $0x30] sm:$0xff]
        %v191 = vld [vmem:[%s158 + $0x38] sm:$0xff]
        %v192 = vld [vmem:[%s158 + $0x40] sm:$0xff]
        %v193 = vld [vmem:[%s158 + $0x48] sm:$0xff]
        %v194 = vld [vmem:[%s158 + $0x50] sm:$0xff]
        %v195 = vld [vmem:[%s158 + $0x58] sm:$0xff]
        %v196 = vld [vmem:[%s158 + $0x60] sm:$0xff]
        %v197 = vld [vmem:[%s158 + $0x68] sm:$0xff]
        %v198 = vld [vmem:[%s158 + $0x70] sm:$0xff]
        %v199 = vld [vmem:[%s158 + $0x78] sm:$0xff]
        %v200 = vld [vmem:[%s158 + $0x80] sm:$0xff]
        %v201 = vld [vmem:[%s158 + $0x88] sm:$0xff]
        %v202 = vld [vmem:[%s158 + $0x90] sm:$0xff]
        %v203 = vld [vmem:[%s158 + $0x98] sm:$0xff]
        %v204 = vld [vmem:[%s158 + $0xa0] sm:$0xff]
        %v205 = vld [vmem:[%s158 + $0xa8] sm:$0xff]
        %v206 = vld [vmem:[%s158 + $0xb0] sm:$0xff]
        %v207 = vld [vmem:[%s158 + $0xb8] sm:$0xff]
        %v208 = vld [vmem:[%s158 + $0xc0] sm:$0xff]
        %v209 = vld [vmem:[%s158 + $0xc8] sm:$0xff]
        %v210 = vld [vmem:[%s158 + $0xd0] sm:$0xff]
        %v211 = vld [vmem:[%s158 + $0xd8] sm:$0xff]
        %v212 = vld [vmem:[%s158 + $0xe0] sm:$0xff]
        %v213 = vld [vmem:[%s158 + $0xe8] sm:$0xff]
        %v214 = vld [vmem:[%s158 + $0xf0] sm:$0xff]
        %v215 = vld [vmem:[%s158 + $0xf8] sm:$0xff]
        %v216 = vld [vmem:[%s158 + $0x100] sm:$0xff]
        %v217 = vld [vmem:[%s158 + $0x108] sm:$0xff]
        %v218 = vld [vmem:[%s158 + $0x110] sm:$0xff]
        %v219 = vld [vmem:[%s158 + $0x118] sm:$0xff]
        %v220 = vld [vmem:[%s158 + $0x120] sm:$0xff]
        %v221 = vld [vmem:[%s158 + $0x128] sm:$0xff]
        %v222 = vld [vmem:[%s158 + $0x130] sm:$0xff]
        %v223 = vld [vmem:[%s158 + $0x138] sm:$0xff]
        %v224 = vld [vmem:[%s158 + $0x140] sm:$0xff]
        %v225 = vld [vmem:[%s158 + $0x148] sm:$0xff]
        %v226 = vld [vmem:[%s158 + $0x150] sm:$0xff]
        %v227 = vld [vmem:[%s158 + $0x158] sm:$0xff]
        %v228 = vld [vmem:[%s158 + $0x160] sm:$0xff]
        %v229 = vld [vmem:[%s158 + $0x168] sm:$0xff]
        %v230 = vld [vmem:[%s158 + $0x170] sm:$0xff]
        %v231 = vld [vmem:[%s158 + $0x178] sm:$0xff]
        %v232 = vld [vmem:[%s158 + $0x180] sm:$0xff]
        %v233 = vld [vmem:[%s158 + $0x188] sm:$0xff]
        %v234 = vld [vmem:[%s158 + $0x190] sm:$0xff]
        %v235 = vld [vmem:[%s158 + $0x198] sm:$0xff]
        %v236 = vld [vmem:[%s158 + $0x1a0] sm:$0xff]
        %v237 = vld [vmem:[%s158 + $0x1a8] sm:$0xff]
        %v238 = vld [vmem:[%s158 + $0x1b0] sm:$0xff]
        %v239 = vld [vmem:[%s158 + $0x1b8] sm:$0xff]
        %v240 = vld [vmem:[%s158 + $0x1c0] sm:$0xff]
        %v241 = vld [vmem:[%s158 + $0x1c8] sm:$0xff]
        %v242 = vld [vmem:[%s158 + $0x1d0] sm:$0xff]
        %v243 = vld [vmem:[%s158 + $0x1d8] sm:$0xff]
        %v244 = vld [vmem:[%s158 + $0x1e0] sm:$0xff]
        %v245 = vld [vmem:[%s158 + $0x1e8] sm:$0xff]
        %v246 = vld [vmem:[%s158 + $0x1f0] sm:$0xff]
        %v247 = vld [vmem:[%s158 + $0x1f8] sm:$0xff]
        %v248 = vld [vmem:[%s158 + $0x200] sm:$0xff]
        %v249 = vld [vmem:[%s158 + $0x208] sm:$0xff]
        %v250 = vld [vmem:[%s158 + $0x210] sm:$0xff]
        %v251 = vld [vmem:[%s158 + $0x218] sm:$0xff]
        %v252 = vld [vmem:[%s158 + $0x220] sm:$0xff]
        %v253 = vld [vmem:[%s158 + $0x228] sm:$0xff]
        %v254 = vld [vmem:[%s158 + $0x230] sm:$0xff]
        %v255 = vld [vmem:[%s158 + $0x238] sm:$0xff]
        %v256 = vld [vmem:[%s158 + $0x240] sm:$0xff]
        %v257 = vld [vmem:[%s158 + $0x248] sm:$0xff]
        %v258 = vld [vmem:[%s158 + $0x250] sm:$0xff]
        %v259 = vld [vmem:[%s158 + $0x258] sm:$0xff]
        %v260 = vld [vmem:[%s158 + $0x260] sm:$0xff]
        %v261 = vld [vmem:[%s158 + $0x268] sm:$0xff]
        %v262 = vld [vmem:[%s158 + $0x270] sm:$0xff]
        %v263 = vld [vmem:[%s158 + $0x278] sm:$0xff]
        %v264 = vld [vmem:[%s158 + $0x280] sm:$0xff]
        %v265 = vld [vmem:[%s158 + $0x288] sm:$0xff]
        %v266 = vld [vmem:[%s158 + $0x290] sm:$0xff]
        %v267 = vld [vmem:[%s158 + $0x298] sm:$0xff]
        %v268 = vld [vmem:[%s158 + $0x2a0] sm:$0xff]
        %v269 = vld [vmem:[%s158 + $0x2a8] sm:$0xff]
        %v270 = vld [vmem:[%s158 + $0x2b0] sm:$0xff]
        %v271 = vld [vmem:[%s158 + $0x2b8] sm:$0xff]
        %v272 = vld [vmem:[%s158 + $0x2c0] sm:$0xff]
        %v273 = vld [vmem:[%s158 + $0x2c8] sm:$0xff]
        %v274 = vld [vmem:[%s158 + $0x2d0] sm:$0xff]
        %v275 = vld [vmem:[%s158 + $0x2d8] sm:$0xff]
        %v276 = vld [vmem:[%s158 + $0x2e0] sm:$0xff]
        %v277 = vld [vmem:[%s158 + $0x2e8] sm:$0xff]
        %v278 = vld [vmem:[%s158 + $0x2f0] sm:$0xff]
        %v279 = vld [vmem:[%s158 + $0x2f8] sm:$0xff]
        %v280 = vld [vmem:[%s158 + $0x300] sm:$0xff]
        %v281 = vld [vmem:[%s158 + $0x308] sm:$0xff]
        %v282 = vld [vmem:[%s158 + $0x310] sm:$0xff]
        %v283 = vld [vmem:[%s158 + $0x318] sm:$0xff]
        %v284 = vld [vmem:[%s158 + $0x320] sm:$0xff]
        %v285 = vld [vmem:[%s158 + $0x328] sm:$0xff]
        %v286 = vld [vmem:[%s158 + $0x330] sm:$0xff]
        %v287 = vld [vmem:[%s158 + $0x338] sm:$0xff]
        %v288 = vld [vmem:[%s158 + $0x340] sm:$0xff]
        %v289 = vld [vmem:[%s158 + $0x348] sm:$0xff]
        %v290 = vld [vmem:[%s158 + $0x350] sm:$0xff]
        %v291 = vld [vmem:[%s158 + $0x358] sm:$0xff]
        %v292 = vld [vmem:[%s158 + $0x360] sm:$0xff]
        %v293 = vld [vmem:[%s158 + $0x368] sm:$0xff]
        %v294 = vld [vmem:[%s158 + $0x370] sm:$0xff]
        %v295 = vld [vmem:[%s158 + $0x378] sm:$0xff]
        %v296 = vld [vmem:[%s158 + $0x380] sm:$0xff]
        %v297 = vld [vmem:[%s158 + $0x388] sm:$0xff]
        %v298 = vld [vmem:[%s158 + $0x390] sm:$0xff]
        %v299 = vld [vmem:[%s158 + $0x398] sm:$0xff]
        %v300 = vld [vmem:[%s158 + $0x3a0] sm:$0xff]
        %v301 = vld [vmem:[%s158 + $0x3a8] sm:$0xff]
        %v302 = vld [vmem:[%s158 + $0x3b0] sm:$0xff]
        %v303 = vld [vmem:[%s158 + $0x3b8] sm:$0xff]
        %v304 = vld [vmem:[%s158 + $0x3c0] sm:$0xff]
        %v305 = vld [vmem:[%s158 + $0x3c8] sm:$0xff]
        %v306 = vld [vmem:[%s158 + $0x3d0] sm:$0xff]
        %v307 = vld [vmem:[%s158 + $0x3d8] sm:$0xff]
        %v308 = vld [vmem:[%s158 + $0x3e0] sm:$0xff]
        %v309 = vld [vmem:[%s158 + $0x3e8] sm:$0xff]
        %v310 = vld [vmem:[%s158 + $0x3f0] sm:$0xff]
        %v311 = vld [vmem:[%s158 + $0x3f8] sm:$0xff]
        %v312 = vld [vmem:[%s158 + $0x400] sm:$0xff]
        %v313 = vld [vmem:[%s158 + $0x408] sm:$0xff]
        %v314 = vld [vmem:[%s158 + $0x410] sm:$0xff]
        %v315 = vld [vmem:[%s158 + $0x418] sm:$0xff]
        %v316 = vld [vmem:[%s158 + $0x420] sm:$0xff]
        %v317 = vld [vmem:[%s158 + $0x428] sm:$0xff]
        %v318 = vld [vmem:[%s158 + $0x430] sm:$0xff]
        %v319 = vld [vmem:[%s158 + $0x438] sm:$0xff]
        %v320 = vld [vmem:[%s158 + $0x440] sm:$0xff]
        %v321 = vld [vmem:[%s158 + $0x448] sm:$0xff]
        %v322 = vld [vmem:[%s158 + $0x450] sm:$0xff]
        %v323 = vld [vmem:[%s158 + $0x458] sm:$0xff]
        %v324 = vld [vmem:[%s158 + $0x460] sm:$0xff]
        %v325 = vld [vmem:[%s158 + $0x468] sm:$0xff]
        %v326 = vld [vmem:[%s158 + $0x470] sm:$0xff]
        %v327 = vld [vmem:[%s158 + $0x478] sm:$0xff]
        %v328 = vld [vmem:[%s158 + $0x480] sm:$0xff]
        %v329 = vld [vmem:[%s158 + $0x488] sm:$0xff]
        %v330 = vld [vmem:[%s158 + $0x490] sm:$0xff]
        %v331 = vld [vmem:[%s158 + $0x498] sm:$0xff]
        %v332 = vld [vmem:[%s158 + $0x4a0] sm:$0xff]
        %v333 = vld [vmem:[%s158 + $0x4a8] sm:$0xff]
        %v334 = vld [vmem:[%s158 + $0x4b0] sm:$0xff]
        %v335 = vld [vmem:[%s158 + $0x4b8] sm:$0xff]
        %v336 = vld [vmem:[%s158 + $0x4c0] sm:$0xff]
        %v337 = vld [vmem:[%s158 + $0x4c8] sm:$0xff]
        %v338 = vld [vmem:[%s158 + $0x4d0] sm:$0xff]
        %v339 = vld [vmem:[%s158 + $0x4d8] sm:$0xff]
        %v340 = vld [vmem:[%s158 + $0x4e0] sm:$0xff]
        %v341 = vld [vmem:[%s158 + $0x4e8] sm:$0xff]
        %v342 = vld [vmem:[%s158 + $0x4f0] sm:$0xff]
        %v343 = vld [vmem:[%s158 + $0x4f8] sm:$0xff]
        %v344 = vld [vmem:[%s158 + $0x500] sm:$0xff]
        %v345 = vld [vmem:[%s158 + $0x508] sm:$0xff]
        %v346 = vld [vmem:[%s158 + $0x510] sm:$0xff]
        %v347 = vld [vmem:[%s158 + $0x518] sm:$0xff]
        %v348 = vld [vmem:[%s158 + $0x520] sm:$0xff]
        %v349 = vld [vmem:[%s158 + $0x528] sm:$0xff]
        %v350 = vld [vmem:[%s158 + $0x530] sm:$0xff]
        %v351 = vld [vmem:[%s158 + $0x538] sm:$0xff]
        %v352 = vld [vmem:[%s158 + $0x540] sm:$0xff]
        %v353 = vld [vmem:[%s158 + $0x548] sm:$0xff]
        %v354 = vld [vmem:[%s158 + $0x550] sm:$0xff]
        %v355 = vld [vmem:[%s158 + $0x558] sm:$0xff]
        %v356 = vld [vmem:[%s158 + $0x560] sm:$0xff]
        %v357 = vld [vmem:[%s158 + $0x568] sm:$0xff]
        %v358 = vld [vmem:[%s158 + $0x570] sm:$0xff]
        %v359 = vld [vmem:[%s158 + $0x578] sm:$0xff]
        %v360 = vld [vmem:[%s158 + $0x580] sm:$0xff]
        %v361 = vld [vmem:[%s158 + $0x588] sm:$0xff]
        %v362 = vld [vmem:[%s158 + $0x590] sm:$0xff]
        %v363 = vld [vmem:[%s158 + $0x598] sm:$0xff]
        %v364 = vld [vmem:[%s158 + $0x5a0] sm:$0xff]
        %v365 = vld [vmem:[%s158 + $0x5a8] sm:$0xff]
        %v366 = vld [vmem:[%s158 + $0x5b0] sm:$0xff]
        %v367 = vld [vmem:[%s158 + $0x5b8] sm:$0xff]
        %v368 = vld [vmem:[%s158 + $0x5c0] sm:$0xff]
        %v369 = vld [vmem:[%s158 + $0x5c8] sm:$0xff]
        %v370 = vld [vmem:[%s158 + $0x5d0] sm:$0xff]
        %v371 = vld [vmem:[%s158 + $0x5d8] sm:$0xff]
        %v372 = vld [vmem:[%s158 + $0x5e0] sm:$0xff]
        %v373 = vld [vmem:[%s158 + $0x5e8] sm:$0xff]
        %v374 = vld [vmem:[%s158 + $0x5f0] sm:$0xff]
        %v375 = vld [vmem:[%s158 + $0x5f8] sm:$0xff]
        %v376 = vld [vmem:[%s158 + $0x600] sm:$0xff]
        %v377 = vld [vmem:[%s158 + $0x608] sm:$0xff]
        %v378 = vld [vmem:[%s158 + $0x610] sm:$0xff]
        %v379 = vld [vmem:[%s158 + $0x618] sm:$0xff]
        %v380 = vld [vmem:[%s158 + $0x620] sm:$0xff]
        %v381 = vld [vmem:[%s158 + $0x628] sm:$0xff]
        %v382 = vld [vmem:[%s158 + $0x630] sm:$0xff]
        %v383 = vld [vmem:[%s158 + $0x638] sm:$0xff]
        %v384 = vld [vmem:[%s158 + $0x640] sm:$0xff]
        %v385 = vld [vmem:[%s158 + $0x648] sm:$0xff]
        %v386 = vld [vmem:[%s158 + $0x650] sm:$0xff]
        %v387 = vld [vmem:[%s158 + $0x658] sm:$0xff]
        %v388 = vld [vmem:[%s158 + $0x660] sm:$0xff]
        %v389 = vld [vmem:[%s158 + $0x668] sm:$0xff]
        %v390 = vld [vmem:[%s158 + $0x670] sm:$0xff]
        %v391 = vld [vmem:[%s158 + $0x678] sm:$0xff]
        %v392 = vld [vmem:[%s158 + $0x680] sm:$0xff]
        %v393 = vld [vmem:[%s158 + $0x688] sm:$0xff]
        %v394 = vld [vmem:[%s158 + $0x690] sm:$0xff]
        %v395 = vld [vmem:[%s158 + $0x698] sm:$0xff]
        %v396 = vld [vmem:[%s158 + $0x6a0] sm:$0xff]
        %v397 = vld [vmem:[%s158 + $0x6a8] sm:$0xff]
        %v398 = vld [vmem:[%s158 + $0x6b0] sm:$0xff]
        %v399 = vld [vmem:[%s158 + $0x6b8] sm:$0xff]
        %v400 = vld [vmem:[%s158 + $0x6c0] sm:$0xff]
        %v401 = vld [vmem:[%s158 + $0x6c8] sm:$0xff]
        %v402 = vld [vmem:[%s158 + $0x6d0] sm:$0xff]
        %v403 = vld [vmem:[%s158 + $0x6d8] sm:$0xff]
        %v404 = vld [vmem:[%s158 + $0x6e0] sm:$0xff]
        %v405 = vld [vmem:[%s158 + $0x6e8] sm:$0xff]
        %v406 = vld [vmem:[%s158 + $0x6f0] sm:$0xff]
        %v407 = vld [vmem:[%s158 + $0x6f8] sm:$0xff]
        %v408 = vld [vmem:[%s158 + $0x700] sm:$0xff]
        %v409 = vld [vmem:[%s158 + $0x708] sm:$0xff]
        %v410 = vld [vmem:[%s158 + $0x710] sm:$0xff]
        %v411 = vld [vmem:[%s158 + $0x718] sm:$0xff]
        %v412 = vld [vmem:[%s158 + $0x720] sm:$0xff]
        %v413 = vld [vmem:[%s158 + $0x728] sm:$0xff]
        %v414 = vld [vmem:[%s158 + $0x730] sm:$0xff]
        %v415 = vld [vmem:[%s158 + $0x738] sm:$0xff]
        %v416 = vld [vmem:[%s158 + $0x740] sm:$0xff]
        %v417 = vld [vmem:[%s158 + $0x748] sm:$0xff]
        %v418 = vld [vmem:[%s158 + $0x750] sm:$0xff]
        %v419 = vld [vmem:[%s158 + $0x758] sm:$0xff]
        %v420 = vld [vmem:[%s158 + $0x760] sm:$0xff]
        %v421 = vld [vmem:[%s158 + $0x768] sm:$0xff]
        %v422 = vld [vmem:[%s158 + $0x770] sm:$0xff]
        %v423 = vld [vmem:[%s158 + $0x778] sm:$0xff]
        %v424 = vld [vmem:[%s158 + $0x780] sm:$0xff]
        %v425 = vld [vmem:[%s158 + $0x788] sm:$0xff]
        %v426 = vld [vmem:[%s158 + $0x790] sm:$0xff]
        %v427 = vld [vmem:[%s158 + $0x798] sm:$0xff]
        %v428 = vld [vmem:[%s158 + $0x7a0] sm:$0xff]
        %v429 = vld [vmem:[%s158 + $0x7a8] sm:$0xff]
        %v430 = vld [vmem:[%s158 + $0x7b0] sm:$0xff]
        %v431 = vld [vmem:[%s158 + $0x7b8] sm:$0xff]
        %v432 = vld [vmem:[%s158 + $0x7c0] sm:$0xff]
        %v433 = vld [vmem:[%s158 + $0x7c8] sm:$0xff]
        %v434 = vld [vmem:[%s158 + $0x7d0] sm:$0xff]
        %v435 = vld [vmem:[%s158 + $0x7d8] sm:$0xff]
        %v436 = vld [vmem:[%s158 + $0x7e0] sm:$0xff]
        %v437 = vld [vmem:[%s158 + $0x7e8] sm:$0xff]
        %v438 = vld [vmem:[%s158 + $0x7f0] sm:$0xff]
        %v439 = vld [vmem:[%s158 + $0x7f8] sm:$0xff]
        %v440 = vld [vmem:[%s158 + $0x800] sm:$0xff]
        %v441 = vld [vmem:[%s158 + $0x808] sm:$0xff]
        %v442 = vld [vmem:[%s158 + $0x810] sm:$0xff]
        %v443 = vld [vmem:[%s158 + $0x818] sm:$0xff]
        %v444 = vld [vmem:[%s158 + $0x820] sm:$0xff]
        %v445 = vld [vmem:[%s158 + $0x828] sm:$0xff]
        %v446 = vld [vmem:[%s158 + $0x830] sm:$0xff]
        %v447 = vld [vmem:[%s158 + $0x838] sm:$0xff]
        %v448 = vld [vmem:[%s158 + $0x840] sm:$0xff]
        %v449 = vld [vmem:[%s158 + $0x848] sm:$0xff]
        %v450 = vld [vmem:[%s158 + $0x850] sm:$0xff]
        %v451 = vld [vmem:[%s158 + $0x858] sm:$0xff]
        %v452 = vld [vmem:[%s158 + $0x860] sm:$0xff]
        %v453 = vld [vmem:[%s158 + $0x868] sm:$0xff]
        %v454 = vld [vmem:[%s158 + $0x870] sm:$0xff]
        %v455 = vld [vmem:[%s158 + $0x878] sm:$0xff]
        %v456 = vld [vmem:[%s158 + $0x880] sm:$0xff]
        %v457 = vld [vmem:[%s158 + $0x888] sm:$0xff]
        %v458 = vld [vmem:[%s158 + $0x890] sm:$0xff]
        %v459 = vld [vmem:[%s158 + $0x898] sm:$0xff]
        %v460 = vld [vmem:[%s158 + $0x8a0] sm:$0xff]
        %v461 = vld [vmem:[%s158 + $0x8a8] sm:$0xff]
        %v462 = vld [vmem:[%s158 + $0x8b0] sm:$0xff]
        %v463 = vld [vmem:[%s158 + $0x8b8] sm:$0xff]
        %v464 = vld [vmem:[%s158 + $0x8c0] sm:$0xff]
        %v465 = vld [vmem:[%s158 + $0x8c8] sm:$0xff]
        %v466 = vld [vmem:[%s158 + $0x8d0] sm:$0xff]
        %v467 = vld [vmem:[%s158 + $0x8d8] sm:$0xff]
        %v468 = vld [vmem:[%s158 + $0x8e0] sm:$0xff]
        %v469 = vld [vmem:[%s158 + $0x8e8] sm:$0xff]
        %v470 = vld [vmem:[%s158 + $0x8f0] sm:$0xff]
        %v471 = vld [vmem:[%s158 + $0x8f8] sm:$0xff]
        %v472 = vld [vmem:[%s158 + $0x900] sm:$0xff]
        %v473 = vld [vmem:[%s158 + $0x908] sm:$0xff]
        %v474 = vld [vmem:[%s158 + $0x910] sm:$0xff]
        %v475 = vld [vmem:[%s158 + $0x918] sm:$0xff]
        %v476 = vld [vmem:[%s158 + $0x920] sm:$0xff]
        %v477 = vld [vmem:[%s158 + $0x928] sm:$0xff]
        %v478 = vld [vmem:[%s158 + $0x930] sm:$0xff]
        %v479 = vld [vmem:[%s158 + $0x938] sm:$0xff]
        %v480 = vld [vmem:[%s158 + $0x940] sm:$0xff]
        %v481 = vld [vmem:[%s158 + $0x948] sm:$0xff]
        %v482 = vld [vmem:[%s158 + $0x950] sm:$0xff]
        %v483 = vld [vmem:[%s158 + $0x958] sm:$0xff]
        %v484 = vld [vmem:[%s158 + $0x960] sm:$0xff]
        %v485 = vld [vmem:[%s158 + $0x968] sm:$0xff]
        %v486 = vld [vmem:[%s158 + $0x970] sm:$0xff]
        %v487 = vld [vmem:[%s158 + $0x978] sm:$0xff]
        %v488 = vld [vmem:[%s158 + $0x980] sm:$0xff]
        %v489 = vld [vmem:[%s158 + $0x988] sm:$0xff]
        %v490 = vld [vmem:[%s158 + $0x990] sm:$0xff]
        %v491 = vld [vmem:[%s158 + $0x998] sm:$0xff]
        %v492 = vld [vmem:[%s158 + $0x9a0] sm:$0xff]
        %v493 = vld [vmem:[%s158 + $0x9a8] sm:$0xff]
        %v494 = vld [vmem:[%s158 + $0x9b0] sm:$0xff]
        %v495 = vld [vmem:[%s158 + $0x9b8] sm:$0xff]
        %v496 = vld [vmem:[%s158 + $0x9c0] sm:$0xff]
        %v497 = vld [vmem:[%s158 + $0x9c8] sm:$0xff]
        %v498 = vld [vmem:[%s158 + $0x9d0] sm:$0xff]
        %v499 = vld [vmem:[%s158 + $0x9d8] sm:$0xff]
        %v500 = vld [vmem:[%s158 + $0x9e0] sm:$0xff]
        %v501 = vld [vmem:[%s158 + $0x9e8] sm:$0xff]
        %v502 = vld [vmem:[%s158 + $0x9f0] sm:$0xff]
        %v503 = vld [vmem:[%s158 + $0x9f8] sm:$0xff]
        %v504 = vld [vmem:[%s158 + $0xa00] sm:$0xff]
        %v505 = vld [vmem:[%s158 + $0xa08] sm:$0xff]
        %v506 = vld [vmem:[%s158 + $0xa10] sm:$0xff]
        %v507 = vld [vmem:[%s158 + $0xa18] sm:$0xff]
        %v508 = vld [vmem:[%s158 + $0xa20] sm:$0xff]
        %v509 = vld [vmem:[%s158 + $0xa28] sm:$0xff]
        %v510 = vld [vmem:[%s158 + $0xa30] sm:$0xff]
        %v511 = vld [vmem:[%s158 + $0xa38] sm:$0xff]
        %v512 = vld [vmem:[%s158 + $0xa40] sm:$0xff]
        %v513 = vld [vmem:[%s158 + $0xa48] sm:$0xff]
        %v514 = vld [vmem:[%s158 + $0xa50] sm:$0xff]
        %v515 = vld [vmem:[%s158 + $0xa58] sm:$0xff]
        %v516 = vld [vmem:[%s158 + $0xa60] sm:$0xff]
        %v517 = vld [vmem:[%s158 + $0xa68] sm:$0xff]
        %v518 = vld [vmem:[%s158 + $0xa70] sm:$0xff]
        %v519 = vld [vmem:[%s158 + $0xa78] sm:$0xff]
        %v520 = vld [vmem:[%s158 + $0xa80] sm:$0xff]
        %v521 = vld [vmem:[%s158 + $0xa88] sm:$0xff]
        %v522 = vld [vmem:[%s158 + $0xa90] sm:$0xff]
        %v523 = vld [vmem:[%s158 + $0xa98] sm:$0xff]
        %v524 = vld [vmem:[%s158 + $0xaa0] sm:$0xff]
        %v525 = vld [vmem:[%s158 + $0xaa8] sm:$0xff]
        %v526 = vld [vmem:[%s158 + $0xab0] sm:$0xff]
        %v527 = vld [vmem:[%s158 + $0xab8] sm:$0xff]
        %v528 = vld [vmem:[%s158 + $0xac0] sm:$0xff]
        %v529 = vld [vmem:[%s158 + $0xac8] sm:$0xff]
        %v530 = vld [vmem:[%s158 + $0xad0] sm:$0xff]
        %v531 = vld [vmem:[%s158 + $0xad8] sm:$0xff]
        %v532 = vld [vmem:[%s158 + $0xae0] sm:$0xff]
        %v533 = vld [vmem:[%s158 + $0xae8] sm:$0xff]
        %v534 = vld [vmem:[%s158 + $0xaf0] sm:$0xff]
        %v535 = vld [vmem:[%s158 + $0xaf8] sm:$0xff]
        %v536 = vld [vmem:[%s158 + $0xb00] sm:$0xff]
        %v537 = vld [vmem:[%s158 + $0xb08] sm:$0xff]
        %v538 = vld [vmem:[%s158 + $0xb10] sm:$0xff]
        %v539 = vld [vmem:[%s158 + $0xb18] sm:$0xff]
        %v540 = vld [vmem:[%s158 + $0xb20] sm:$0xff]
        %v541 = vld [vmem:[%s158 + $0xb28] sm:$0xff]
        %v542 = vld [vmem:[%s158 + $0xb30] sm:$0xff]
        %v543 = vld [vmem:[%s158 + $0xb38] sm:$0xff]
        %v544 = vld [vmem:[%s158 + $0xb40] sm:$0xff]
        %v545 = vld [vmem:[%s158 + $0xb48] sm:$0xff]
        %v546 = vld [vmem:[%s158 + $0xb50] sm:$0xff]
        %v547 = vld [vmem:[%s158 + $0xb58] sm:$0xff]
        %v548 = vld [vmem:[%s158 + $0xb60] sm:$0xff]
        %v549 = vld [vmem:[%s158 + $0xb68] sm:$0xff]
        %v550 = vld [vmem:[%s158 + $0xb70] sm:$0xff]
        %v551 = vld [vmem:[%s158 + $0xb78] sm:$0xff]
        %v552 = vld [vmem:[%s158 + $0xb80] sm:$0xff]
        %v553 = vld [vmem:[%s158 + $0xb88] sm:$0xff]
        %v554 = vld [vmem:[%s158 + $0xb90] sm:$0xff]
        %v555 = vld [vmem:[%s158 + $0xb98] sm:$0xff]
        %v556 = vld [vmem:[%s158 + $0xba0] sm:$0xff]
        %v557 = vld [vmem:[%s158 + $0xba8] sm:$0xff]
        %v558 = vld [vmem:[%s158 + $0xbb0] sm:$0xff]
        %v559 = vld [vmem:[%s158 + $0xbb8] sm:$0xff]
        %v560 = vld [vmem:[%s158 + $0xbc0] sm:$0xff]
        %v561 = vld [vmem:[%s158 + $0xbc8] sm:$0xff]
        %v562 = vld [vmem:[%s158 + $0xbd0] sm:$0xff]
        %v563 = vld [vmem:[%s158 + $0xbd8] sm:$0xff]
        %v564 = vld [vmem:[%s158 + $0xbe0] sm:$0xff]
        %v565 = vld [vmem:[%s158 + $0xbe8] sm:$0xff]
        %v566 = vld [vmem:[%s158 + $0xbf0] sm:$0xff]
        %v567 = vld [vmem:[%s158 + $0xbf8] sm:$0xff]
        %v568 = vld [vmem:[%s158 + $0xc00] sm:$0xff]
        %v569 = vld [vmem:[%s158 + $0xc08] sm:$0xff]
        %v570 = vld [vmem:[%s158 + $0xc10] sm:$0xff]
        %v571 = vld [vmem:[%s158 + $0xc18] sm:$0xff]
        %v572 = vld [vmem:[%s158 + $0xc20] sm:$0xff]
        %v573 = vld [vmem:[%s158 + $0xc28] sm:$0xff]
        %v574 = vld [vmem:[%s158 + $0xc30] sm:$0xff]
        %v575 = vld [vmem:[%s158 + $0xc38] sm:$0xff]
        %v576 = vld [vmem:[%s158 + $0xc40] sm:$0xff]
        %v577 = vld [vmem:[%s158 + $0xc48] sm:$0xff]
        %v578 = vld [vmem:[%s158 + $0xc50] sm:$0xff]
        %v579 = vld [vmem:[%s158 + $0xc58] sm:$0xff]
        %v580 = vld [vmem:[%s158 + $0xc60] sm:$0xff]
        %v581 = vld [vmem:[%s158 + $0xc68] sm:$0xff]
        %v582 = vld [vmem:[%s158 + $0xc70] sm:$0xff]
        %v583 = vld [vmem:[%s158 + $0xc78] sm:$0xff]
        %v584 = vld [vmem:[%s158 + $0xc80] sm:$0xff]
        %v585 = vld [vmem:[%s158 + $0xc88] sm:$0xff]
        %v586 = vld [vmem:[%s158 + $0xc90] sm:$0xff]
        %v587 = vld [vmem:[%s158 + $0xc98] sm:$0xff]
        %v588 = vld [vmem:[%s158 + $0xca0] sm:$0xff]
        %v589 = vld [vmem:[%s158 + $0xca8] sm:$0xff]
        %v590 = vld [vmem:[%s158 + $0xcb0] sm:$0xff]
        %v591 = vld [vmem:[%s158 + $0xcb8] sm:$0xff]
        %v592 = vld [vmem:[%s158 + $0xcc0] sm:$0xff]
        %v593 = vld [vmem:[%s158 + $0xcc8] sm:$0xff]
        %v594 = vld [vmem:[%s158 + $0xcd0] sm:$0xff]
        %v595 = vld [vmem:[%s158 + $0xcd8] sm:$0xff]
        %v596 = vld [vmem:[%s158 + $0xce0] sm:$0xff]
        %v597 = vld [vmem:[%s158 + $0xce8] sm:$0xff]
        %v598 = vld [vmem:[%s158 + $0xcf0] sm:$0xff]
        %v599 = vld [vmem:[%s158 + $0xcf8] sm:$0xff]
        %v600 = vld [vmem:[%s158 + $0xd00] sm:$0xff]
        %v601 = vld [vmem:[%s158 + $0xd08] sm:$0xff]
        %v602 = vld [vmem:[%s158 + $0xd10] sm:$0xff]
        %v603 = vld [vmem:[%s158 + $0xd18] sm:$0xff]
        %v604 = vld [vmem:[%s158 + $0xd20] sm:$0xff]
        %v605 = vld [vmem:[%s158 + $0xd28] sm:$0xff]
        %v606 = vld [vmem:[%s158 + $0xd30] sm:$0xff]
        %v607 = vld [vmem:[%s158 + $0xd38] sm:$0xff]
        %v608 = vld [vmem:[%s158 + $0xd40] sm:$0xff]
        %v609 = vld [vmem:[%s158 + $0xd48] sm:$0xff]
        %v610 = vld [vmem:[%s158 + $0xd50] sm:$0xff]
        %v611 = vld [vmem:[%s158 + $0xd58] sm:$0xff]
        %v612 = vld [vmem:[%s158 + $0xd60] sm:$0xff]
        %v613 = vld [vmem:[%s158 + $0xd68] sm:$0xff]
        %v614 = vld [vmem:[%s158 + $0xd70] sm:$0xff]
        %v615 = vld [vmem:[%s158 + $0xd78] sm:$0xff]
        %v616 = vld [vmem:[%s158 + $0xd80] sm:$0xff]
        %v617 = vld [vmem:[%s158 + $0xd88] sm:$0xff]
        %v618 = vld [vmem:[%s158 + $0xd90] sm:$0xff]
        %v619 = vld [vmem:[%s158 + $0xd98] sm:$0xff]
        %v620 = vld [vmem:[%s158 + $0xda0] sm:$0xff]
        %v621 = vld [vmem:[%s158 + $0xda8] sm:$0xff]
        %v622 = vld [vmem:[%s158 + $0xdb0] sm:$0xff]
        %v623 = vld [vmem:[%s158 + $0xdb8] sm:$0xff]
        %v624 = vld [vmem:[%s158 + $0xdc0] sm:$0xff]
        %v625 = vld [vmem:[%s158 + $0xdc8] sm:$0xff]
        %v626 = vld [vmem:[%s158 + $0xdd0] sm:$0xff]
        %v627 = vld [vmem:[%s158 + $0xdd8] sm:$0xff]
        %v628 = vld [vmem:[%s158 + $0xde0] sm:$0xff]
        %v629 = vld [vmem:[%s158 + $0xde8] sm:$0xff]
        %v630 = vld [vmem:[%s158 + $0xdf0] sm:$0xff]
        %v631 = vld [vmem:[%s158 + $0xdf8] sm:$0xff]
        %v632 = vld [vmem:[%s158 + $0xe00] sm:$0xff]
        %v633 = vld [vmem:[%s158 + $0xe08] sm:$0xff]
        %v634 = vld [vmem:[%s158 + $0xe10] sm:$0xff]
        %v635 = vld [vmem:[%s158 + $0xe18] sm:$0xff]
        %v636 = vld [vmem:[%s158 + $0xe20] sm:$0xff]
        %v637 = vld [vmem:[%s158 + $0xe28] sm:$0xff]
        %v638 = vld [vmem:[%s158 + $0xe30] sm:$0xff]
        %v639 = vld [vmem:[%s158 + $0xe38] sm:$0xff]
        %v640 = vld [vmem:[%s158 + $0xe40] sm:$0xff]
        %v641 = vld [vmem:[%s158 + $0xe48] sm:$0xff]
        %v642 = vld [vmem:[%s158 + $0xe50] sm:$0xff]
        %v643 = vld [vmem:[%s158 + $0xe58] sm:$0xff]
        %v644 = vld [vmem:[%s158 + $0xe60] sm:$0xff]
        %v645 = vld [vmem:[%s158 + $0xe68] sm:$0xff]
        %v646 = vld [vmem:[%s158 + $0xe70] sm:$0xff]
        %v647 = vld [vmem:[%s158 + $0xe78] sm:$0xff]
        %v648 = vld [vmem:[%s158 + $0xe80] sm:$0xff]
        %v649 = vld [vmem:[%s158 + $0xe88] sm:$0xff]
        %v650 = vld [vmem:[%s158 + $0xe90] sm:$0xff]
        %v651 = vld [vmem:[%s158 + $0xe98] sm:$0xff]
        %v652 = vld [vmem:[%s158 + $0xea0] sm:$0xff]
        %v653 = vld [vmem:[%s158 + $0xea8] sm:$0xff]
        %v654 = vld [vmem:[%s158 + $0xeb0] sm:$0xff]
        %v655 = vld [vmem:[%s158 + $0xeb8] sm:$0xff]
        %v656 = vld [vmem:[%s158 + $0xec0] sm:$0xff]
        %v657 = vld [vmem:[%s158 + $0xec8] sm:$0xff]
        %v658 = vld [vmem:[%s158 + $0xed0] sm:$0xff]
        %v659 = vld [vmem:[%s158 + $0xed8] sm:$0xff]
        %v660 = vld [vmem:[%s158 + $0xee0] sm:$0xff]
        %v661 = vld [vmem:[%s158 + $0xee8] sm:$0xff]
        %v662 = vld [vmem:[%s158 + $0xef0] sm:$0xff]
        %v663 = vld [vmem:[%s158 + $0xef8] sm:$0xff]
        %v664 = vld [vmem:[%s158 + $0xf00] sm:$0xff]
        %v665 = vld [vmem:[%s158 + $0xf08] sm:$0xff]
        %v666 = vld [vmem:[%s158 + $0xf10] sm:$0xff]
        %v667 = vld [vmem:[%s158 + $0xf18] sm:$0xff]
        %v668 = vld [vmem:[%s158 + $0xf20] sm:$0xff]
        %v669 = vld [vmem:[%s158 + $0xf28] sm:$0xff]
        %v670 = vld [vmem:[%s158 + $0xf30] sm:$0xff]
        %v671 = vld [vmem:[%s158 + $0xf38] sm:$0xff]
        %v672 = vld [vmem:[%s158 + $0xf40] sm:$0xff]
        %v673 = vld [vmem:[%s158 + $0xf48] sm:$0xff]
        %v674 = vld [vmem:[%s158 + $0xf50] sm:$0xff]
        %v675 = vld [vmem:[%s158 + $0xf58] sm:$0xff]
        %v676 = vld [vmem:[%s158 + $0xf60] sm:$0xff]
        %v677 = vld [vmem:[%s158 + $0xf68] sm:$0xff]
        %v678 = vld [vmem:[%s158 + $0xf70] sm:$0xff]
        %v679 = vld [vmem:[%s158 + $0xf78] sm:$0xff]
        %v680 = vld [vmem:[%s158 + $0xf80] sm:$0xff]
        %v681 = vld [vmem:[%s158 + $0xf88] sm:$0xff]
        %v682 = vld [vmem:[%s158 + $0xf90] sm:$0xff]
        %v683 = vld [vmem:[%s158 + $0xf98] sm:$0xff]
        %v684 = vld [vmem:[%s158 + $0xfa0] sm:$0xff]
        %v685 = vld [vmem:[%s158 + $0xfa8] sm:$0xff]
        %v686 = vld [vmem:[%s158 + $0xfb0] sm:$0xff]
        %v687 = vld [vmem:[%s158 + $0xfb8] sm:$0xff]
        %v688 = vld [vmem:[%s158 + $0xfc0] sm:$0xff]
        %v689 = vld [vmem:[%s158 + $0xfc8] sm:$0xff]
        %v690 = vld [vmem:[%s158 + $0xfd0] sm:$0xff]
        %v691 = vld [vmem:[%s158 + $0xfd8] sm:$0xff]
        %v692 = vld [vmem:[%s158 + $0xfe0] sm:$0xff]
        %v693 = vld [vmem:[%s158 + $0xfe8] sm:$0xff]
        %v694 = vld [vmem:[%s158 + $0xff0] sm:$0xff]
        %v695 = vld [vmem:[%s158 + $0xff8] sm:$0xff]
        %698 = vst [vmem:[#allocation1] ss:$4 sm:$0xff] %v182
        %s699 = scalar_lea.vmem [#allocation1], 32
        %700 = vst [vmem:[%s699] ss:$4 sm:$0xff] %v183
        %v701 = vld.sshfl [vmem:[#allocation1] sm:$0xff pattern:$0x73625140]
        %v702 = vld.sshfl [vmem:[#allocation1 + $0x8] sm:$0xff pattern:$0x73625140]
        %v703 = vld.sshfl [vmem:[#allocation1 + $0x10] sm:$0xff pattern:$0x73625140]
        %v704 = vld.sshfl [vmem:[#allocation1 + $0x18] sm:$0xff pattern:$0x73625140]
        %v705 = vld.sshfl [vmem:[#allocation1 + $0x20] sm:$0xff pattern:$0x73625140]
        %v706 = vld.sshfl [vmem:[#allocation1 + $0x28] sm:$0xff pattern:$0x73625140]
        %v707 = vld.sshfl [vmem:[#allocation1 + $0x30] sm:$0xff pattern:$0x73625140]
        %v708 = vld.sshfl [vmem:[#allocation1 + $0x38] sm:$0xff pattern:$0x73625140]
        %717 = vmatpush.xpose.msra.mxu0 %v304
        %718 = vmatpush.xpose.msra.mxu0 %v296
        %719 = vmatpush.xpose.msra.mxu0 %v288
        %720 = vmatpush.xpose.msra.mxu0 %v280
        %721 = vmatpush.xpose.msra.mxu0 %v272
        %722 = vmatpush.xpose.msra.mxu0 %v264
        %723 = vmatpush.xpose.msra.mxu0 %v256
        %724 = vmatpush.xpose.msra.mxu0 %v248
        %725 = vmatpush.xpose.msra.mxu0 %v240
        %726 = vmatpush.xpose.msra.mxu0 %v232
        %727 = vmatpush.xpose.msra.mxu0 %v224
        %728 = vmatpush.xpose.msra.mxu0 %v216
        %729 = vmatpush.xpose.msra.mxu0 %v208
        %730 = vmatpush.xpose.msra.mxu0 %v200
        %731 = vmatpush.xpose.msra.mxu0 %v192
        %732 = vmatpush.xpose.msra.mxu0 %v184
        %733 = vmatmul.f32.gmra.mxu0 %v701
        %v734 = vpop.f32.mrf.mxu0
        %v735 = vadd.f32 0.0, %v734
        %736 = vdwg.mxu0
        %737 = vmatpush.xpose.msra.mxu0 %v305
        %738 = vmatpush.xpose.msra.mxu0 %v297
        %739 = vmatpush.xpose.msra.mxu0 %v289
        %740 = vmatpush.xpose.msra.mxu0 %v281
        %741 = vmatpush.xpose.msra.mxu0 %v273
        %742 = vmatpush.xpose.msra.mxu0 %v265
        %743 = vmatpush.xpose.msra.mxu0 %v257
        %744 = vmatpush.xpose.msra.mxu0 %v249
        %745 = vmatpush.xpose.msra.mxu0 %v241
        %746 = vmatpush.xpose.msra.mxu0 %v233
        %747 = vmatpush.xpose.msra.mxu0 %v225
        %748 = vmatpush.xpose.msra.mxu0 %v217
        %749 = vmatpush.xpose.msra.mxu0 %v209
        %750 = vmatpush.xpose.msra.mxu0 %v201
        %751 = vmatpush.xpose.msra.mxu0 %v193
        %752 = vmatpush.xpose.msra.mxu0 %v185
        %753 = vmatmul.f32.gmra.mxu0 %v702
        %v754 = vpop.f32.mrf.mxu0
        %v755 = vadd.f32 %v735, %v754
        %756 = vdwg.mxu0
        %757 = vmatpush.xpose.msra.mxu0 %v306
        %758 = vmatpush.xpose.msra.mxu0 %v298
        %759 = vmatpush.xpose.msra.mxu0 %v290
        %760 = vmatpush.xpose.msra.mxu0 %v282
        %761 = vmatpush.xpose.msra.mxu0 %v274
        %762 = vmatpush.xpose.msra.mxu0 %v266
        %763 = vmatpush.xpose.msra.mxu0 %v258
        %764 = vmatpush.xpose.msra.mxu0 %v250
        %765 = vmatpush.xpose.msra.mxu0 %v242
        %766 = vmatpush.xpose.msra.mxu0 %v234
        %767 = vmatpush.xpose.msra.mxu0 %v226
        %768 = vmatpush.xpose.msra.mxu0 %v218
        %769 = vmatpush.xpose.msra.mxu0 %v210
        %770 = vmatpush.xpose.msra.mxu0 %v202
        %771 = vmatpush.xpose.msra.mxu0 %v194
        %772 = vmatpush.xpose.msra.mxu0 %v186
        %773 = vmatmul.f32.gmra.mxu0 %v703
        %v774 = vpop.f32.mrf.mxu0
        %v775 = vadd.f32 %v755, %v774
        %776 = vdwg.mxu0
        %777 = vmatpush.xpose.msra.mxu0 %v307
        %778 = vmatpush.xpose.msra.mxu0 %v299
        %779 = vmatpush.xpose.msra.mxu0 %v291
        %780 = vmatpush.xpose.msra.mxu0 %v283
        %781 = vmatpush.xpose.msra.mxu0 %v275
        %782 = vmatpush.xpose.msra.mxu0 %v267
        %783 = vmatpush.xpose.msra.mxu0 %v259
        %784 = vmatpush.xpose.msra.mxu0 %v251
        %785 = vmatpush.xpose.msra.mxu0 %v243
        %786 = vmatpush.xpose.msra.mxu0 %v235
        %787 = vmatpush.xpose.msra.mxu0 %v227
        %788 = vmatpush.xpose.msra.mxu0 %v219
        %789 = vmatpush.xpose.msra.mxu0 %v211
        %790 = vmatpush.xpose.msra.mxu0 %v203
        %791 = vmatpush.xpose.msra.mxu0 %v195
        %792 = vmatpush.xpose.msra.mxu0 %v187
        %793 = vmatmul.f32.gmra.mxu0 %v704
        %v794 = vpop.f32.mrf.mxu0
        %v795 = vadd.f32 %v775, %v794
        %796 = vdwg.mxu0
        %797 = vmatpush.xpose.msra.mxu0 %v308
        %798 = vmatpush.xpose.msra.mxu0 %v300
        %799 = vmatpush.xpose.msra.mxu0 %v292
        %800 = vmatpush.xpose.msra.mxu0 %v284
        %801 = vmatpush.xpose.msra.mxu0 %v276
        %802 = vmatpush.xpose.msra.mxu0 %v268
        %803 = vmatpush.xpose.msra.mxu0 %v260
        %804 = vmatpush.xpose.msra.mxu0 %v252
        %805 = vmatpush.xpose.msra.mxu0 %v244
        %806 = vmatpush.xpose.msra.mxu0 %v236
        %807 = vmatpush.xpose.msra.mxu0 %v228
        %808 = vmatpush.xpose.msra.mxu0 %v220
        %809 = vmatpush.xpose.msra.mxu0 %v212
        %810 = vmatpush.xpose.msra.mxu0 %v204
        %811 = vmatpush.xpose.msra.mxu0 %v196
        %812 = vmatpush.xpose.msra.mxu0 %v188
        %813 = vmatmul.f32.gmra.mxu0 %v705
        %v814 = vpop.f32.mrf.mxu0
        %v815 = vadd.f32 %v795, %v814
        %816 = vdwg.mxu0
        %817 = vmatpush.xpose.msra.mxu0 %v309
        %818 = vmatpush.xpose.msra.mxu0 %v301
        %819 = vmatpush.xpose.msra.mxu0 %v293
        %820 = vmatpush.xpose.msra.mxu0 %v285
        %821 = vmatpush.xpose.msra.mxu0 %v277
        %822 = vmatpush.xpose.msra.mxu0 %v269
        %823 = vmatpush.xpose.msra.mxu0 %v261
        %824 = vmatpush.xpose.msra.mxu0 %v253
        %825 = vmatpush.xpose.msra.mxu0 %v245
        %826 = vmatpush.xpose.msra.mxu0 %v237
        %827 = vmatpush.xpose.msra.mxu0 %v229
        %828 = vmatpush.xpose.msra.mxu0 %v221
        %829 = vmatpush.xpose.msra.mxu0 %v213
        %830 = vmatpush.xpose.msra.mxu0 %v205
        %831 = vmatpush.xpose.msra.mxu0 %v197
        %832 = vmatpush.xpose.msra.mxu0 %v189
        %833 = vmatmul.f32.gmra.mxu0 %v706
        %v834 = vpop.f32.mrf.mxu0
        %v835 = vadd.f32 %v815, %v834
        %836 = vdwg.mxu0
        %837 = vmatpush.xpose.msra.mxu0 %v310
        %838 = vmatpush.xpose.msra.mxu0 %v302
        %839 = vmatpush.xpose.msra.mxu0 %v294
        %840 = vmatpush.xpose.msra.mxu0 %v286
        %841 = vmatpush.xpose.msra.mxu0 %v278
        %842 = vmatpush.xpose.msra.mxu0 %v270
        %843 = vmatpush.xpose.msra.mxu0 %v262
        %844 = vmatpush.xpose.msra.mxu0 %v254
        %845 = vmatpush.xpose.msra.mxu0 %v246
        %846 = vmatpush.xpose.msra.mxu0 %v238
        %847 = vmatpush.xpose.msra.mxu0 %v230
        %848 = vmatpush.xpose.msra.mxu0 %v222
        %849 = vmatpush.xpose.msra.mxu0 %v214
        %850 = vmatpush.xpose.msra.mxu0 %v206
        %851 = vmatpush.xpose.msra.mxu0 %v198
        %852 = vmatpush.xpose.msra.mxu0 %v190
        %853 = vmatmul.f32.gmra.mxu0 %v707
        %v854 = vpop.f32.mrf.mxu0
        %v855 = vadd.f32 %v835, %v854
        %856 = vdwg.mxu0
        %857 = vmatpush.xpose.msra.mxu0 %v311
        %858 = vmatpush.xpose.msra.mxu0 %v303
        %859 = vmatpush.xpose.msra.mxu0 %v295
        %860 = vmatpush.xpose.msra.mxu0 %v287
        %861 = vmatpush.xpose.msra.mxu0 %v279
        %862 = vmatpush.xpose.msra.mxu0 %v271
        %863 = vmatpush.xpose.msra.mxu0 %v263
        %864 = vmatpush.xpose.msra.mxu0 %v255
        %865 = vmatpush.xpose.msra.mxu0 %v247
        %866 = vmatpush.xpose.msra.mxu0 %v239
        %867 = vmatpush.xpose.msra.mxu0 %v231
        %868 = vmatpush.xpose.msra.mxu0 %v223
        %869 = vmatpush.xpose.msra.mxu0 %v215
        %870 = vmatpush.xpose.msra.mxu0 %v207
        %871 = vmatpush.xpose.msra.mxu0 %v199
        %872 = vmatpush.xpose.msra.mxu0 %v191
        %873 = vmatmul.f32.gmra.mxu0 %v708
        %v874 = vpop.f32.mrf.mxu0
        %v875 = vadd.f32 %v855, %v874
        %876 = vdwg.mxu0
        %877 = vmatpush.xpose.msra.mxu0 %v432
        %878 = vmatpush.xpose.msra.mxu0 %v424
        %879 = vmatpush.xpose.msra.mxu0 %v416
        %880 = vmatpush.xpose.msra.mxu0 %v408
        %881 = vmatpush.xpose.msra.mxu0 %v400
        %882 = vmatpush.xpose.msra.mxu0 %v392
        %883 = vmatpush.xpose.msra.mxu0 %v384
        %884 = vmatpush.xpose.msra.mxu0 %v376
        %885 = vmatpush.xpose.msra.mxu0 %v368
        %886 = vmatpush.xpose.msra.mxu0 %v360
        %887 = vmatpush.xpose.msra.mxu0 %v352
        %888 = vmatpush.xpose.msra.mxu0 %v344
        %889 = vmatpush.xpose.msra.mxu0 %v336
        %890 = vmatpush.xpose.msra.mxu0 %v328
        %891 = vmatpush.xpose.msra.mxu0 %v320
        %892 = vmatpush.xpose.msra.mxu0 %v312
        %893 = vmatmul.f32.gmra.mxu0 %v701
        %v894 = vpop.f32.mrf.mxu0
        %v895 = vadd.f32 0.0, %v894
        %896 = vdwg.mxu0
        %897 = vmatpush.xpose.msra.mxu0 %v433
        %898 = vmatpush.xpose.msra.mxu0 %v425
        %899 = vmatpush.xpose.msra.mxu0 %v417
        %900 = vmatpush.xpose.msra.mxu0 %v409
        %901 = vmatpush.xpose.msra.mxu0 %v401
        %902 = vmatpush.xpose.msra.mxu0 %v393
        %903 = vmatpush.xpose.msra.mxu0 %v385
        %904 = vmatpush.xpose.msra.mxu0 %v377
        %905 = vmatpush.xpose.msra.mxu0 %v369
        %906 = vmatpush.xpose.msra.mxu0 %v361
        %907 = vmatpush.xpose.msra.mxu0 %v353
        %908 = vmatpush.xpose.msra.mxu0 %v345
        %909 = vmatpush.xpose.msra.mxu0 %v337
        %910 = vmatpush.xpose.msra.mxu0 %v329
        %911 = vmatpush.xpose.msra.mxu0 %v321
        %912 = vmatpush.xpose.msra.mxu0 %v313
        %913 = vmatmul.f32.gmra.mxu0 %v702
        %v914 = vpop.f32.mrf.mxu0
        %v915 = vadd.f32 %v895, %v914
        %916 = vdwg.mxu0
        %917 = vmatpush.xpose.msra.mxu0 %v434
        %918 = vmatpush.xpose.msra.mxu0 %v426
        %919 = vmatpush.xpose.msra.mxu0 %v418
        %920 = vmatpush.xpose.msra.mxu0 %v410
        %921 = vmatpush.xpose.msra.mxu0 %v402
        %922 = vmatpush.xpose.msra.mxu0 %v394
        %923 = vmatpush.xpose.msra.mxu0 %v386
        %924 = vmatpush.xpose.msra.mxu0 %v378
        %925 = vmatpush.xpose.msra.mxu0 %v370
        %926 = vmatpush.xpose.msra.mxu0 %v362
        %927 = vmatpush.xpose.msra.mxu0 %v354
        %928 = vmatpush.xpose.msra.mxu0 %v346
        %929 = vmatpush.xpose.msra.mxu0 %v338
        %930 = vmatpush.xpose.msra.mxu0 %v330
        %931 = vmatpush.xpose.msra.mxu0 %v322
        %932 = vmatpush.xpose.msra.mxu0 %v314
        %933 = vmatmul.f32.gmra.mxu0 %v703
        %v934 = vpop.f32.mrf.mxu0
        %v935 = vadd.f32 %v915, %v934
        %936 = vdwg.mxu0
        %937 = vmatpush.xpose.msra.mxu0 %v435
        %938 = vmatpush.xpose.msra.mxu0 %v427
        %939 = vmatpush.xpose.msra.mxu0 %v419
        %940 = vmatpush.xpose.msra.mxu0 %v411
        %941 = vmatpush.xpose.msra.mxu0 %v403
        %942 = vmatpush.xpose.msra.mxu0 %v395
        %943 = vmatpush.xpose.msra.mxu0 %v387
        %944 = vmatpush.xpose.msra.mxu0 %v379
        %945 = vmatpush.xpose.msra.mxu0 %v371
        %946 = vmatpush.xpose.msra.mxu0 %v363
        %947 = vmatpush.xpose.msra.mxu0 %v355
        %948 = vmatpush.xpose.msra.mxu0 %v347
        %949 = vmatpush.xpose.msra.mxu0 %v339
        %950 = vmatpush.xpose.msra.mxu0 %v331
        %951 = vmatpush.xpose.msra.mxu0 %v323
        %952 = vmatpush.xpose.msra.mxu0 %v315
        %953 = vmatmul.f32.gmra.mxu0 %v704
        %v954 = vpop.f32.mrf.mxu0
        %v955 = vadd.f32 %v935, %v954
        %956 = vdwg.mxu0
        %957 = vmatpush.xpose.msra.mxu0 %v436
        %958 = vmatpush.xpose.msra.mxu0 %v428
        %959 = vmatpush.xpose.msra.mxu0 %v420
        %960 = vmatpush.xpose.msra.mxu0 %v412
        %961 = vmatpush.xpose.msra.mxu0 %v404
        %962 = vmatpush.xpose.msra.mxu0 %v396
        %963 = vmatpush.xpose.msra.mxu0 %v388
        %964 = vmatpush.xpose.msra.mxu0 %v380
        %965 = vmatpush.xpose.msra.mxu0 %v372
        %966 = vmatpush.xpose.msra.mxu0 %v364
        %967 = vmatpush.xpose.msra.mxu0 %v356
        %968 = vmatpush.xpose.msra.mxu0 %v348
        %969 = vmatpush.xpose.msra.mxu0 %v340
        %970 = vmatpush.xpose.msra.mxu0 %v332
        %971 = vmatpush.xpose.msra.mxu0 %v324
        %972 = vmatpush.xpose.msra.mxu0 %v316
        %973 = vmatmul.f32.gmra.mxu0 %v705
        %v974 = vpop.f32.mrf.mxu0
        %v975 = vadd.f32 %v955, %v974
        %976 = vdwg.mxu0
        %977 = vmatpush.xpose.msra.mxu0 %v437
        %978 = vmatpush.xpose.msra.mxu0 %v429
        %979 = vmatpush.xpose.msra.mxu0 %v421
        %980 = vmatpush.xpose.msra.mxu0 %v413
        %981 = vmatpush.xpose.msra.mxu0 %v405
        %982 = vmatpush.xpose.msra.mxu0 %v397
        %983 = vmatpush.xpose.msra.mxu0 %v389
        %984 = vmatpush.xpose.msra.mxu0 %v381
        %985 = vmatpush.xpose.msra.mxu0 %v373
        %986 = vmatpush.xpose.msra.mxu0 %v365
        %987 = vmatpush.xpose.msra.mxu0 %v357
        %988 = vmatpush.xpose.msra.mxu0 %v349
        %989 = vmatpush.xpose.msra.mxu0 %v341
        %990 = vmatpush.xpose.msra.mxu0 %v333
        %991 = vmatpush.xpose.msra.mxu0 %v325
        %992 = vmatpush.xpose.msra.mxu0 %v317
        %993 = vmatmul.f32.gmra.mxu0 %v706
        %v994 = vpop.f32.mrf.mxu0
        %v995 = vadd.f32 %v975, %v994
        %996 = vdwg.mxu0
        %997 = vmatpush.xpose.msra.mxu0 %v438
        %998 = vmatpush.xpose.msra.mxu0 %v430
        %999 = vmatpush.xpose.msra.mxu0 %v422
        %1000 = vmatpush.xpose.msra.mxu0 %v414
        %1001 = vmatpush.xpose.msra.mxu0 %v406
        %1002 = vmatpush.xpose.msra.mxu0 %v398
        %1003 = vmatpush.xpose.msra.mxu0 %v390
        %1004 = vmatpush.xpose.msra.mxu0 %v382
        %1005 = vmatpush.xpose.msra.mxu0 %v374
        %1006 = vmatpush.xpose.msra.mxu0 %v366
        %1007 = vmatpush.xpose.msra.mxu0 %v358
        %1008 = vmatpush.xpose.msra.mxu0 %v350
        %1009 = vmatpush.xpose.msra.mxu0 %v342
        %1010 = vmatpush.xpose.msra.mxu0 %v334
        %1011 = vmatpush.xpose.msra.mxu0 %v326
        %1012 = vmatpush.xpose.msra.mxu0 %v318
        %1013 = vmatmul.f32.gmra.mxu0 %v707
        %v1014 = vpop.f32.mrf.mxu0
        %v1015 = vadd.f32 %v995, %v1014
        %1016 = vdwg.mxu0
        %1017 = vmatpush.xpose.msra.mxu0 %v439
        %1018 = vmatpush.xpose.msra.mxu0 %v431
        %1019 = vmatpush.xpose.msra.mxu0 %v423
        %1020 = vmatpush.xpose.msra.mxu0 %v415
        %1021 = vmatpush.xpose.msra.mxu0 %v407
        %1022 = vmatpush.xpose.msra.mxu0 %v399
        %1023 = vmatpush.xpose.msra.mxu0 %v391
        %1024 = vmatpush.xpose.msra.mxu0 %v383
        %1025 = vmatpush.xpose.msra.mxu0 %v375
        %1026 = vmatpush.xpose.msra.mxu0 %v367
        %1027 = vmatpush.xpose.msra.mxu0 %v359
        %1028 = vmatpush.xpose.msra.mxu0 %v351
        %1029 = vmatpush.xpose.msra.mxu0 %v343
        %1030 = vmatpush.xpose.msra.mxu0 %v335
        %1031 = vmatpush.xpose.msra.mxu0 %v327
        %1032 = vmatpush.xpose.msra.mxu0 %v319
        %1033 = vmatmul.f32.gmra.mxu0 %v708
        %v1034 = vpop.f32.mrf.mxu0
        %v1035 = vadd.f32 %v1015, %v1034
        %1036 = vdwg.mxu0
        %1037 = vmatpush.xpose.msra.mxu0 %v560
        %1038 = vmatpush.xpose.msra.mxu0 %v552
        %1039 = vmatpush.xpose.msra.mxu0 %v544
        %1040 = vmatpush.xpose.msra.mxu0 %v536
        %1041 = vmatpush.xpose.msra.mxu0 %v528
        %1042 = vmatpush.xpose.msra.mxu0 %v520
        %1043 = vmatpush.xpose.msra.mxu0 %v512
        %1044 = vmatpush.xpose.msra.mxu0 %v504
        %1045 = vmatpush.xpose.msra.mxu0 %v496
        %1046 = vmatpush.xpose.msra.mxu0 %v488
        %1047 = vmatpush.xpose.msra.mxu0 %v480
        %1048 = vmatpush.xpose.msra.mxu0 %v472
        %1049 = vmatpush.xpose.msra.mxu0 %v464
        %1050 = vmatpush.xpose.msra.mxu0 %v456
        %1051 = vmatpush.xpose.msra.mxu0 %v448
        %1052 = vmatpush.xpose.msra.mxu0 %v440
        %1053 = vmatmul.f32.gmra.mxu0 %v701
        %v1054 = vpop.f32.mrf.mxu0
        %v1055 = vadd.f32 0.0, %v1054
        %1056 = vdwg.mxu0
        %1057 = vmatpush.xpose.msra.mxu0 %v561
        %1058 = vmatpush.xpose.msra.mxu0 %v553
        %1059 = vmatpush.xpose.msra.mxu0 %v545
        %1060 = vmatpush.xpose.msra.mxu0 %v537
        %1061 = vmatpush.xpose.msra.mxu0 %v529
        %1062 = vmatpush.xpose.msra.mxu0 %v521
        %1063 = vmatpush.xpose.msra.mxu0 %v513
        %1064 = vmatpush.xpose.msra.mxu0 %v505
        %1065 = vmatpush.xpose.msra.mxu0 %v497
        %1066 = vmatpush.xpose.msra.mxu0 %v489
        %1067 = vmatpush.xpose.msra.mxu0 %v481
        %1068 = vmatpush.xpose.msra.mxu0 %v473
        %1069 = vmatpush.xpose.msra.mxu0 %v465
        %1070 = vmatpush.xpose.msra.mxu0 %v457
        %1071 = vmatpush.xpose.msra.mxu0 %v449
        %1072 = vmatpush.xpose.msra.mxu0 %v441
        %1073 = vmatmul.f32.gmra.mxu0 %v702
        %v1074 = vpop.f32.mrf.mxu0
        %v1075 = vadd.f32 %v1055, %v1074
        %1076 = vdwg.mxu0
        %1077 = vmatpush.xpose.msra.mxu0 %v562
        %1078 = vmatpush.xpose.msra.mxu0 %v554
        %1079 = vmatpush.xpose.msra.mxu0 %v546
        %1080 = vmatpush.xpose.msra.mxu0 %v538
        %1081 = vmatpush.xpose.msra.mxu0 %v530
        %1082 = vmatpush.xpose.msra.mxu0 %v522
        %1083 = vmatpush.xpose.msra.mxu0 %v514
        %1084 = vmatpush.xpose.msra.mxu0 %v506
        %1085 = vmatpush.xpose.msra.mxu0 %v498
        %1086 = vmatpush.xpose.msra.mxu0 %v490
        %1087 = vmatpush.xpose.msra.mxu0 %v482
        %1088 = vmatpush.xpose.msra.mxu0 %v474
        %1089 = vmatpush.xpose.msra.mxu0 %v466
        %1090 = vmatpush.xpose.msra.mxu0 %v458
        %1091 = vmatpush.xpose.msra.mxu0 %v450
        %1092 = vmatpush.xpose.msra.mxu0 %v442
        %1093 = vmatmul.f32.gmra.mxu0 %v703
        %v1094 = vpop.f32.mrf.mxu0
        %v1095 = vadd.f32 %v1075, %v1094
        %1096 = vdwg.mxu0
        %1097 = vmatpush.xpose.msra.mxu0 %v563
        %1098 = vmatpush.xpose.msra.mxu0 %v555
        %1099 = vmatpush.xpose.msra.mxu0 %v547
        %1100 = vmatpush.xpose.msra.mxu0 %v539
        %1101 = vmatpush.xpose.msra.mxu0 %v531
        %1102 = vmatpush.xpose.msra.mxu0 %v523
        %1103 = vmatpush.xpose.msra.mxu0 %v515
        %1104 = vmatpush.xpose.msra.mxu0 %v507
        %1105 = vmatpush.xpose.msra.mxu0 %v499
        %1106 = vmatpush.xpose.msra.mxu0 %v491
        %1107 = vmatpush.xpose.msra.mxu0 %v483
        %1108 = vmatpush.xpose.msra.mxu0 %v475
        %1109 = vmatpush.xpose.msra.mxu0 %v467
        %1110 = vmatpush.xpose.msra.mxu0 %v459
        %1111 = vmatpush.xpose.msra.mxu0 %v451
        %1112 = vmatpush.xpose.msra.mxu0 %v443
        %1113 = vmatmul.f32.gmra.mxu0 %v704
        %v1114 = vpop.f32.mrf.mxu0
        %v1115 = vadd.f32 %v1095, %v1114
        %1116 = vdwg.mxu0
        %1117 = vmatpush.xpose.msra.mxu0 %v564
        %1118 = vmatpush.xpose.msra.mxu0 %v556
        %1119 = vmatpush.xpose.msra.mxu0 %v548
        %1120 = vmatpush.xpose.msra.mxu0 %v540
        %1121 = vmatpush.xpose.msra.mxu0 %v532
        %1122 = vmatpush.xpose.msra.mxu0 %v524
        %1123 = vmatpush.xpose.msra.mxu0 %v516
        %1124 = vmatpush.xpose.msra.mxu0 %v508
        %1125 = vmatpush.xpose.msra.mxu0 %v500
        %1126 = vmatpush.xpose.msra.mxu0 %v492
        %1127 = vmatpush.xpose.msra.mxu0 %v484
        %1128 = vmatpush.xpose.msra.mxu0 %v476
        %1129 = vmatpush.xpose.msra.mxu0 %v468
        %1130 = vmatpush.xpose.msra.mxu0 %v460
        %1131 = vmatpush.xpose.msra.mxu0 %v452
        %1132 = vmatpush.xpose.msra.mxu0 %v444
        %1133 = vmatmul.f32.gmra.mxu0 %v705
        %v1134 = vpop.f32.mrf.mxu0
        %v1135 = vadd.f32 %v1115, %v1134
        %1136 = vdwg.mxu0
        %1137 = vmatpush.xpose.msra.mxu0 %v565
        %1138 = vmatpush.xpose.msra.mxu0 %v557
        %1139 = vmatpush.xpose.msra.mxu0 %v549
        %1140 = vmatpush.xpose.msra.mxu0 %v541
        %1141 = vmatpush.xpose.msra.mxu0 %v533
        %1142 = vmatpush.xpose.msra.mxu0 %v525
        %1143 = vmatpush.xpose.msra.mxu0 %v517
        %1144 = vmatpush.xpose.msra.mxu0 %v509
        %1145 = vmatpush.xpose.msra.mxu0 %v501
        %1146 = vmatpush.xpose.msra.mxu0 %v493
        %1147 = vmatpush.xpose.msra.mxu0 %v485
        %1148 = vmatpush.xpose.msra.mxu0 %v477
        %1149 = vmatpush.xpose.msra.mxu0 %v469
        %1150 = vmatpush.xpose.msra.mxu0 %v461
        %1151 = vmatpush.xpose.msra.mxu0 %v453
        %1152 = vmatpush.xpose.msra.mxu0 %v445
        %1153 = vmatmul.f32.gmra.mxu0 %v706
        %v1154 = vpop.f32.mrf.mxu0
        %v1155 = vadd.f32 %v1135, %v1154
        %1156 = vdwg.mxu0
        %1157 = vmatpush.xpose.msra.mxu0 %v566
        %1158 = vmatpush.xpose.msra.mxu0 %v558
        %1159 = vmatpush.xpose.msra.mxu0 %v550
        %1160 = vmatpush.xpose.msra.mxu0 %v542
        %1161 = vmatpush.xpose.msra.mxu0 %v534
        %1162 = vmatpush.xpose.msra.mxu0 %v526
        %1163 = vmatpush.xpose.msra.mxu0 %v518
        %1164 = vmatpush.xpose.msra.mxu0 %v510
        %1165 = vmatpush.xpose.msra.mxu0 %v502
        %1166 = vmatpush.xpose.msra.mxu0 %v494
        %1167 = vmatpush.xpose.msra.mxu0 %v486
        %1168 = vmatpush.xpose.msra.mxu0 %v478
        %1169 = vmatpush.xpose.msra.mxu0 %v470
        %1170 = vmatpush.xpose.msra.mxu0 %v462
        %1171 = vmatpush.xpose.msra.mxu0 %v454
        %1172 = vmatpush.xpose.msra.mxu0 %v446
        %1173 = vmatmul.f32.gmra.mxu0 %v707
        %v1174 = vpop.f32.mrf.mxu0
        %v1175 = vadd.f32 %v1155, %v1174
        %1176 = vdwg.mxu0
        %1177 = vmatpush.xpose.msra.mxu0 %v567
        %1178 = vmatpush.xpose.msra.mxu0 %v559
        %1179 = vmatpush.xpose.msra.mxu0 %v551
        %1180 = vmatpush.xpose.msra.mxu0 %v543
        %1181 = vmatpush.xpose.msra.mxu0 %v535
        %1182 = vmatpush.xpose.msra.mxu0 %v527
        %1183 = vmatpush.xpose.msra.mxu0 %v519
        %1184 = vmatpush.xpose.msra.mxu0 %v511
        %1185 = vmatpush.xpose.msra.mxu0 %v503
        %1186 = vmatpush.xpose.msra.mxu0 %v495
        %1187 = vmatpush.xpose.msra.mxu0 %v487
        %1188 = vmatpush.xpose.msra.mxu0 %v479
        %1189 = vmatpush.xpose.msra.mxu0 %v471
        %1190 = vmatpush.xpose.msra.mxu0 %v463
        %1191 = vmatpush.xpose.msra.mxu0 %v455
        %1192 = vmatpush.xpose.msra.mxu0 %v447
        %1193 = vmatmul.f32.gmra.mxu0 %v708
        %v1194 = vpop.f32.mrf.mxu0
        %v1195 = vadd.f32 %v1175, %v1194
        %1196 = vdwg.mxu0
        %1197 = vmatpush.xpose.msra.mxu0 %v688
        %1198 = vmatpush.xpose.msra.mxu0 %v680
        %1199 = vmatpush.xpose.msra.mxu0 %v672
        %1200 = vmatpush.xpose.msra.mxu0 %v664
        %1201 = vmatpush.xpose.msra.mxu0 %v656
        %1202 = vmatpush.xpose.msra.mxu0 %v648
        %1203 = vmatpush.xpose.msra.mxu0 %v640
        %1204 = vmatpush.xpose.msra.mxu0 %v632
        %1205 = vmatpush.xpose.msra.mxu0 %v624
        %1206 = vmatpush.xpose.msra.mxu0 %v616
        %1207 = vmatpush.xpose.msra.mxu0 %v608
        %1208 = vmatpush.xpose.msra.mxu0 %v600
        %1209 = vmatpush.xpose.msra.mxu0 %v592
        %1210 = vmatpush.xpose.msra.mxu0 %v584
        %1211 = vmatpush.xpose.msra.mxu0 %v576
        %1212 = vmatpush.xpose.msra.mxu0 %v568
        %1213 = vmatmul.f32.gmra.mxu0 %v701
        %v1214 = vpop.f32.mrf.mxu0
        %v1215 = vadd.f32 0.0, %v1214
        %1216 = vdwg.mxu0
        %1217 = vmatpush.xpose.msra.mxu0 %v689
        %1218 = vmatpush.xpose.msra.mxu0 %v681
        %1219 = vmatpush.xpose.msra.mxu0 %v673
        %1220 = vmatpush.xpose.msra.mxu0 %v665
        %1221 = vmatpush.xpose.msra.mxu0 %v657
        %1222 = vmatpush.xpose.msra.mxu0 %v649
        %1223 = vmatpush.xpose.msra.mxu0 %v641
        %1224 = vmatpush.xpose.msra.mxu0 %v633
        %1225 = vmatpush.xpose.msra.mxu0 %v625
        %1226 = vmatpush.xpose.msra.mxu0 %v617
        %1227 = vmatpush.xpose.msra.mxu0 %v609
        %1228 = vmatpush.xpose.msra.mxu0 %v601
        %1229 = vmatpush.xpose.msra.mxu0 %v593
        %1230 = vmatpush.xpose.msra.mxu0 %v585
        %1231 = vmatpush.xpose.msra.mxu0 %v577
        %1232 = vmatpush.xpose.msra.mxu0 %v569
        %1233 = vmatmul.f32.gmra.mxu0 %v702
        %v1234 = vpop.f32.mrf.mxu0
        %v1235 = vadd.f32 %v1215, %v1234
        %1236 = vdwg.mxu0
        %1237 = vmatpush.xpose.msra.mxu0 %v690
        %1238 = vmatpush.xpose.msra.mxu0 %v682
        %1239 = vmatpush.xpose.msra.mxu0 %v674
        %1240 = vmatpush.xpose.msra.mxu0 %v666
        %1241 = vmatpush.xpose.msra.mxu0 %v658
        %1242 = vmatpush.xpose.msra.mxu0 %v650
        %1243 = vmatpush.xpose.msra.mxu0 %v642
        %1244 = vmatpush.xpose.msra.mxu0 %v634
        %1245 = vmatpush.xpose.msra.mxu0 %v626
        %1246 = vmatpush.xpose.msra.mxu0 %v618
        %1247 = vmatpush.xpose.msra.mxu0 %v610
        %1248 = vmatpush.xpose.msra.mxu0 %v602
        %1249 = vmatpush.xpose.msra.mxu0 %v594
        %1250 = vmatpush.xpose.msra.mxu0 %v586
        %1251 = vmatpush.xpose.msra.mxu0 %v578
        %1252 = vmatpush.xpose.msra.mxu0 %v570
        %1253 = vmatmul.f32.gmra.mxu0 %v703
        %v1254 = vpop.f32.mrf.mxu0
        %v1255 = vadd.f32 %v1235, %v1254
        %1256 = vdwg.mxu0
        %1257 = vmatpush.xpose.msra.mxu0 %v691
        %1258 = vmatpush.xpose.msra.mxu0 %v683
        %1259 = vmatpush.xpose.msra.mxu0 %v675
        %1260 = vmatpush.xpose.msra.mxu0 %v667
        %1261 = vmatpush.xpose.msra.mxu0 %v659
        %1262 = vmatpush.xpose.msra.mxu0 %v651
        %1263 = vmatpush.xpose.msra.mxu0 %v643
        %1264 = vmatpush.xpose.msra.mxu0 %v635
        %1265 = vmatpush.xpose.msra.mxu0 %v627
        %1266 = vmatpush.xpose.msra.mxu0 %v619
        %1267 = vmatpush.xpose.msra.mxu0 %v611
        %1268 = vmatpush.xpose.msra.mxu0 %v603
        %1269 = vmatpush.xpose.msra.mxu0 %v595
        %1270 = vmatpush.xpose.msra.mxu0 %v587
        %1271 = vmatpush.xpose.msra.mxu0 %v579
        %1272 = vmatpush.xpose.msra.mxu0 %v571
        %1273 = vmatmul.f32.gmra.mxu0 %v704
        %v1274 = vpop.f32.mrf.mxu0
        %v1275 = vadd.f32 %v1255, %v1274
        %1276 = vdwg.mxu0
        %1277 = vmatpush.xpose.msra.mxu0 %v692
        %1278 = vmatpush.xpose.msra.mxu0 %v684
        %1279 = vmatpush.xpose.msra.mxu0 %v676
        %1280 = vmatpush.xpose.msra.mxu0 %v668
        %1281 = vmatpush.xpose.msra.mxu0 %v660
        %1282 = vmatpush.xpose.msra.mxu0 %v652
        %1283 = vmatpush.xpose.msra.mxu0 %v644
        %1284 = vmatpush.xpose.msra.mxu0 %v636
        %1285 = vmatpush.xpose.msra.mxu0 %v628
        %1286 = vmatpush.xpose.msra.mxu0 %v620
        %1287 = vmatpush.xpose.msra.mxu0 %v612
        %1288 = vmatpush.xpose.msra.mxu0 %v604
        %1289 = vmatpush.xpose.msra.mxu0 %v596
        %1290 = vmatpush.xpose.msra.mxu0 %v588
        %1291 = vmatpush.xpose.msra.mxu0 %v580
        %1292 = vmatpush.xpose.msra.mxu0 %v572
        %1293 = vmatmul.f32.gmra.mxu0 %v705
        %v1294 = vpop.f32.mrf.mxu0
        %v1295 = vadd.f32 %v1275, %v1294
        %1296 = vdwg.mxu0
        %1297 = vmatpush.xpose.msra.mxu0 %v693
        %1298 = vmatpush.xpose.msra.mxu0 %v685
        %1299 = vmatpush.xpose.msra.mxu0 %v677
        %1300 = vmatpush.xpose.msra.mxu0 %v669
        %1301 = vmatpush.xpose.msra.mxu0 %v661
        %1302 = vmatpush.xpose.msra.mxu0 %v653
        %1303 = vmatpush.xpose.msra.mxu0 %v645
        %1304 = vmatpush.xpose.msra.mxu0 %v637
        %1305 = vmatpush.xpose.msra.mxu0 %v629
        %1306 = vmatpush.xpose.msra.mxu0 %v621
        %1307 = vmatpush.xpose.msra.mxu0 %v613
        %1308 = vmatpush.xpose.msra.mxu0 %v605
        %1309 = vmatpush.xpose.msra.mxu0 %v597
        %1310 = vmatpush.xpose.msra.mxu0 %v589
        %1311 = vmatpush.xpose.msra.mxu0 %v581
        %1312 = vmatpush.xpose.msra.mxu0 %v573
        %1313 = vmatmul.f32.gmra.mxu0 %v706
        %v1314 = vpop.f32.mrf.mxu0
        %v1315 = vadd.f32 %v1295, %v1314
        %1316 = vdwg.mxu0
        %1317 = vmatpush.xpose.msra.mxu0 %v694
        %1318 = vmatpush.xpose.msra.mxu0 %v686
        %1319 = vmatpush.xpose.msra.mxu0 %v678
        %1320 = vmatpush.xpose.msra.mxu0 %v670
        %1321 = vmatpush.xpose.msra.mxu0 %v662
        %1322 = vmatpush.xpose.msra.mxu0 %v654
        %1323 = vmatpush.xpose.msra.mxu0 %v646
        %1324 = vmatpush.xpose.msra.mxu0 %v638
        %1325 = vmatpush.xpose.msra.mxu0 %v630
        %1326 = vmatpush.xpose.msra.mxu0 %v622
        %1327 = vmatpush.xpose.msra.mxu0 %v614
        %1328 = vmatpush.xpose.msra.mxu0 %v606
        %1329 = vmatpush.xpose.msra.mxu0 %v598
        %1330 = vmatpush.xpose.msra.mxu0 %v590
        %1331 = vmatpush.xpose.msra.mxu0 %v582
        %1332 = vmatpush.xpose.msra.mxu0 %v574
        %1333 = vmatmul.f32.gmra.mxu0 %v707
        %v1334 = vpop.f32.mrf.mxu0
        %v1335 = vadd.f32 %v1315, %v1334
        %1336 = vdwg.mxu0
        %1337 = vmatpush.xpose.msra.mxu0 %v695
        %1338 = vmatpush.xpose.msra.mxu0 %v687
        %1339 = vmatpush.xpose.msra.mxu0 %v679
        %1340 = vmatpush.xpose.msra.mxu0 %v671
        %1341 = vmatpush.xpose.msra.mxu0 %v663
        %1342 = vmatpush.xpose.msra.mxu0 %v655
        %1343 = vmatpush.xpose.msra.mxu0 %v647
        %1344 = vmatpush.xpose.msra.mxu0 %v639
        %1345 = vmatpush.xpose.msra.mxu0 %v631
        %1346 = vmatpush.xpose.msra.mxu0 %v623
        %1347 = vmatpush.xpose.msra.mxu0 %v615
        %1348 = vmatpush.xpose.msra.mxu0 %v607
        %1349 = vmatpush.xpose.msra.mxu0 %v599
        %1350 = vmatpush.xpose.msra.mxu0 %v591
        %1351 = vmatpush.xpose.msra.mxu0 %v583
        %1352 = vmatpush.xpose.msra.mxu0 %v575
        %1353 = vmatmul.f32.gmra.mxu0 %v708
        %v1354 = vpop.f32.mrf.mxu0
        %v1355 = vadd.f32 %v1335, %v1354
        %1356 = vdwg.mxu0
        %vm1357 = vcmask 1041408
        %v1358 = vsel %vm1357, %v875, inf
        %v1359 = vsel %vm1357, %v1035, inf
        %v1360 = vmin.f32 %v1358, %v1359
        %1361 = vmin.xlane.f32.xlu0 %v1360
        %v1362 = vpop.xlane.xlu0 %1361
        %v1363 = vsub.f32 %v875, %v1362
        %v1364 = vsub.f32 %v1035, %v1362
        %v1365 = vsel %vm1357, %v1363, -inf
        %v1366 = vsel %vm1357, %v1364, -inf
        %v1367 = vmax.f32 %v1365, %v1366
        %1368 = vmax.xlane.f32.xlu0 %v1367
        %v1369 = vpop.xlane.xlu0 %1368
        %v1370 = vrcp.pop %v1369
        %v1371 = vmul.f32 %v1369, %v1370
        %v1372 = vsub.f32 1.0, %v1371
        %v1373 = vmul.f32 %v1370, %v1372
        %v1374 = vadd.f32 %v1370, %v1373
        %vm1375 = vweird.f32 %v1369
        %vm1376 = vweird.f32 %v1370
        %vm1377 = vmor %vm1375, %vm1376
        %v1378 = vsel %vm1377, %v1370, %v1374
        %v1379 = vand.u32 2147483647, %v1369
        %vm1380 = vcmp.eq.f32.partialorder %v1379, 8.507059e+37
        %v1381 = vand.u32 %v1369, 2147483648
        %v1382 = vor.u32 1.1754944e-38, %v1381
        %v1383 = vsel %vm1380, %v1382, %v1378
        %v1384 = vmul.f32 %v1363, %v1383
        %v1385 = vmul.f32 %v1364, %v1383
        %v1388 = vrot.slane %v1385, 6
        %v1389 = vsel %vm1357, %v1384, %v1388
        %1391 = vst [vmem:[%s179] sm:$0xf] %v1389
        %v1392 = vsel %vm1357, %v1195, inf
        %v1393 = vsel %vm1357, %v1355, inf
        %v1394 = vmin.f32 %v1392, %v1393
        %1395 = vmin.xlane.f32.xlu0 %v1394
        %v1396 = vpop.xlane.xlu0 %1395
        %v1397 = vsub.f32 %v1195, %v1396
        %v1398 = vsub.f32 %v1355, %v1396
        %v1399 = vsel %vm1357, %v1397, -inf
        %v1400 = vsel %vm1357, %v1398, -inf
        %v1401 = vmax.f32 %v1399, %v1400
        %1402 = vmax.xlane.f32.xlu0 %v1401
        %v1403 = vpop.xlane.xlu0 %1402
        %v1404 = vrcp.pop %v1403
        %v1405 = vmul.f32 %v1403, %v1404
        %v1406 = vsub.f32 1.0, %v1405
        %v1407 = vmul.f32 %v1404, %v1406
        %v1408 = vadd.f32 %v1404, %v1407
        %vm1409 = vweird.f32 %v1403
        %vm1410 = vweird.f32 %v1404
        %vm1411 = vmor %vm1409, %vm1410
        %v1412 = vsel %vm1411, %v1404, %v1408
        %v1413 = vand.u32 2147483647, %v1403
        %vm1414 = vcmp.eq.f32.partialorder %v1413, 8.507059e+37
        %v1415 = vand.u32 %v1403, 2147483648
        %v1416 = vor.u32 1.1754944e-38, %v1415
        %v1417 = vsel %vm1414, %v1416, %v1412
        %v1418 = vmul.f32 %v1397, %v1417
        %v1419 = vmul.f32 %v1398, %v1417
        %v1422 = vrot.slane %v1419, 6
        %v1423 = vsel %vm1357, %v1418, %v1422
        %1425 = vst [vmem:[%s179 + $0x4] sm:$0xf] %v1423
        %s1426 = sand.u32 %s75, 1
        %s1427 = scalar_lea.sflag [#allocation4], %s1426
        %s1428 = sand.u32 %s75, 1
        %s1429 = smul.addr %s1428, 8
        %s1430 = scalar_lea.vmem [#allocation7], %s1429
        // Predicated region
        $region37: #{tpu_custom_call.1} parent=27 // pred_check
          %p1431 = pneg %p85
        $region38: #{tpu_custom_call.1} parent=27 // pred_check_branch
          %1433 = sbr.rel (%p1431) target = $region40
        $region39: #{tpu_custom_call.1} parent=27 // pred_region
          %s1434 = smul.u32 4, %s20
          %1436 = vsyncadd %s1427, 0
          %s1437 = smul.addr %s1434, 2
          %s1438 = scalar_lea.hbm %s2, %s1437
          %s1440 = sshll.u32 %s1430, 4
          %s1441 = int_to_ptr.vmem [resolvable:$true] %s1440
          %s1442 = sshll.u32 %s1438, 4
          %s1443 = int_to_ptr.hbm [resolvable:$true] %s1442
          %1445 = dma.vmem_to_hbm [thread:$0]  %s1441, 128, %s1443, %s1427
        $region40: #{tpu_custom_call.1} parent=27 // pred_fallthru
          _
      $region28: #{tpu_custom_call.1} parent=5 // pred_fallthru
        _
      %p1446 = scmp.le.s32.totalorder 2, %s15
      // Predicated region
      $region41: #{tpu_custom_call.1} parent=5 // pred_check
        %p1447 = pneg %p1446
      $region42: #{tpu_custom_call.1} parent=5 // pred_check_branch
        %1449 = sbr.rel (%p1447) target = $region44
      $region43: #{tpu_custom_call.1} parent=5 // pred_region
        %s1450 = ssub.s32 %s15, 2
        // Predicated region
        $region45: #{tpu_custom_call.1} parent=43 // pred_check
          %p1451 = pneg %p91
        $region46: #{tpu_custom_call.1} parent=43 // pred_check_branch
          %1453 = sbr.rel (%p1451) target = $region48
        $region47: #{tpu_custom_call.1} parent=43 // pred_region
          %s1454 = sand.u32 %s76, 1
          %s1455 = scalar_lea.sflag [#allocation4], %s1454
          %s1456 = sand.u32 %s76, 1
          %s1457 = smul.addr %s1456, 8
          %s1458 = scalar_lea.vmem [#allocation7], %s1457
          %1460 = dma.done %s1455, 128
        $region48: #{tpu_custom_call.1} parent=43 // pred_fallthru
          _
      $region44: #{tpu_custom_call.1} parent=5 // pred_fallthru
        _
    $region6: #{tpu_custom_call.1} parent=1 // loop_footer
      %s19 = sadd.s32 1, %s15
    $region7: #{tpu_custom_call.1} parent=1 // loop_footer_branch
      %14 = sbr.rel target = $region3
    $region8: #{tpu_custom_call.1} parent=1 // loop_exit
      _
    %1461 = vsyncpa [#allocation3], 1
    %s1462 = scalar_lea.sflag [#allocation3], 1
    %1463 = vsyncpa %s1462, 1
    %1464 = vsyncpa [#allocation6], 1
    %s1465 = scalar_lea.sflag [#allocation6], 1
    %1466 = vsyncpa %s1465, 1
    %1467 = vsyncpa [#allocation4], 1
    %s1468 = scalar_lea.sflag [#allocation4], 1
    %1469 = vsyncpa %s1468, 1

</llo_original>
